<compile_context>
chip_gen: v7x
topology: tpu7x:2x2x1
jax: 0.10.0
libtpu: 0.0.40
codegen_flags: <defaults>
</compile_context>

<pallas_src>
import functools

import numpy as np
import jax
import jax.numpy as jnp
from jax.experimental import pallas as pl
from jax.experimental.pallas import tpu as pltpu

C_IN, C1, C2, N_CLASSES = 3, 16, 32, 2
OUT_PAD = 128      # lane-dense output width; real logits are the first 2 lanes
BATCH_TILE = 8     # images per grid step


# ---------------------------- fused Pallas kernel ----------------------------

def _fused_forward_kernel(x_ref, c1w_ref, c1b_ref, c2w_ref, c2b_ref,
                          fcw_ref, savg_ref, fcb_ref, o_ref, *, bh, half):
    f32 = jnp.float32
    x = x_ref[...]                                     # [B*H, W*Cin] bf16
    m1 = bh - 2                                        # stacked conv1 output rows

    # Conv1 (3x3 valid) + bias + ReLU: 3 tall banded GEMMs over the stacked
    # batch (rows straddling an image boundary produce junk that is never read
    # downstream).  Output lanes: [even conv cols | odd conv cols], `half` each.
    acc1 = jnp.dot(x[0:m1], c1w_ref[0], preferred_element_type=f32)
    acc1 = acc1 + jnp.dot(x[1:m1 + 1], c1w_ref[1], preferred_element_type=f32)
    acc1 = acc1 + jnp.dot(x[2:m1 + 2], c1w_ref[2], preferred_element_type=f32)
    y1 = jnp.maximum(acc1 + c1b_ref[...], 0.0)         # [bh-2, 2*half] f32

    # MaxPool2d(2) (floor mode) with zero MXU work: pairwise row max on
    # sublane-shifted slices, then pairwise column max between the even/odd
    # 128-lane halves (aligned lane slices).  Rows stay uncompacted.
    rmax = jnp.maximum(y1[0:m1 - 1], y1[1:m1])         # [bh-3, 2*half] f32
    cmax = jnp.maximum(rmax[:, 0:half],
                       rmax[:, half:2 * half]).astype(jnp.bfloat16)  # [bh-3, half]

    # Conv2 (3x3 valid on pooled grid -> stride-2 row shifts here) + bias + ReLU.
    m2 = bh - 7                                        # stacked conv2 output rows
    acc2 = jnp.dot(cmax[0:m2], c2w_ref[0], preferred_element_type=f32)
    acc2 = acc2 + jnp.dot(cmax[2:m2 + 2], c2w_ref[1], preferred_element_type=f32)
    acc2 = acc2 + jnp.dot(cmax[4:m2 + 4], c2w_ref[2], preferred_element_type=f32)
    y3 = jnp.maximum(acc2 + c2b_ref[...], 0.0).astype(jnp.bfloat16)  # [bh-7, OW2*C2]

    # AdaptiveAvgPool2d(1) + Flatten + Linear(32,2), batched across the step:
    # apply the (1/(OH2*OW2))-scaled FC at every row position, then a one-hot
    # f32 selector GEMM sums each image's 5 valid (stride-2) rows, keeping all
    # reductions of sums in f32.  Single lane/sublane-dense [B,128] store.
    t = jnp.dot(y3, fcw_ref[...], preferred_element_type=f32)        # [bh-7, 128]
    logits = jnp.dot(savg_ref[...], t, preferred_element_type=f32)   # [B, 128]
    o_ref[...] = logits + fcb_ref[...]


# ------------------------- parameter preparation (host) ----------------------

def init_params(key):
    """Synthetic params in PyTorch layouts: Conv2d W [Cout,Cin,KH,KW], Linear W [out,in]."""
    ks = jax.random.split(key, 6)
    w1 = jax.random.normal(ks[0], (C1, C_IN, 3, 3), jnp.float32) * 0.10
    b1 = jax.random.normal(ks[1], (C1,), jnp.float32) * 0.01
    w2 = jax.random.normal(ks[2], (C2, C1, 3, 3), jnp.float32) * 0.05
    b2 = jax.random.normal(ks[3], (C2,), jnp.float32) * 0.01
    w3 = jax.random.normal(ks[4], (N_CLASSES, C2), jnp.float32) * 0.10
    b3 = jax.random.normal(ks[5], (N_CLASSES,), jnp.float32) * 0.01
    return (w1, b1, w2, b2, w3, b3)


def _banded_conv_weight(w_oihw, ow):
    """[Cout,Cin,3,3] -> [3, (ow+2)*Cin, ow*Cout] banded GEMM weights (per kernel row)."""
    cout, cin, kh, kw = w_oihw.shape
    iw = ow + kw - 1
    band = np.zeros((kh, iw * cin, ow * cout), np.float32)
    w_np = np.asarray(w_oihw)
    for di in range(kh):
        for oc in range(ow):
            for dj in range(kw):
                wi = oc + dj
                band[di, wi * cin:(wi + 1) * cin, oc * cout:(oc + 1) * cout] = \
                    w_np[:, :, di, dj].T
    return band


def _banded_conv1_weight(w_oihw, ow, half):
    """Like _banded_conv_weight, but output columns are permuted so even conv
    columns land in lanes [0,half) and odd ones in [half,2*half) (pad lanes 0),
    turning the MaxPool column pairing into a single aligned VPU max."""
    cout, cin, kh, kw = w_oihw.shape
    iw = ow + kw - 1
    band = np.zeros((kh, iw * cin, 2 * half), np.float32)
    w_np = np.asarray(w_oihw)
    for di in range(kh):
        for oc in range(ow):
            lane0 = (oc % 2) * half + (oc // 2) * cout
            for dj in range(kw):
                wi = oc + dj
                band[di, wi * cin:(wi + 1) * cin, lane0:lane0 + cout] = \
                    w_np[:, :, di, dj].T
    return band


def prepare_kernel_params(params, h, w, batch_tile):
    w1, b1, w2, b2, w3, b3 = params
    oh1, ow1 = h - 2, w - 2                  # conv1 output
    ph, pw = oh1 // 2, ow1 // 2              # MaxPool2d(2), floor mode
    oh2, ow2 = ph - 2, pw - 2                # conv2 output
    half = ((pw * C1 + 127) // 128) * 128    # even/odd half width (lane padded) = 128
    bh = batch_tile * h

    # Conv1 band with even/odd output-column split (+ zero pad lanes) and bias.
    band1 = _banded_conv1_weight(np.asarray(w1), ow1, half)      # [3, W*Cin, 2*half]
    c1b = np.zeros((1, 2 * half), np.float32)
    for parity in range(2):
        for q in range(pw):
            c1b[0, parity * half + q * C1: parity * half + (q + 1) * C1] = np.asarray(b1)

    # Conv2 band over compacted pooled columns, zero-padded to `half` K rows.
    band2 = _banded_conv_weight(np.asarray(w2), ow2)              # [3, pw*C1, OW2*C2]
    band2 = np.pad(band2, ((0, 0), (0, half - band2.shape[1]), (0, 0)))
    c2b = np.tile(np.asarray(b2), ow2)[None, :]                   # [1, OW2*C2]

    # AvgPool(1)+Linear folded: per-row FC weight (1/(OH2*OW2) folded in, padded
    # to 128 lanes) + one-hot selector summing each image's valid conv2 rows.
    fcw = np.zeros((ow2 * C2, OUT_PAD), np.float32)
    w3_scaled = np.asarray(w3).T / float(oh2 * ow2)               # [C2, 2]
    for oc in range(ow2):
        fcw[oc * C2:(oc + 1) * C2, :N_CLASSES] = w3_scaled
    fcb = np.zeros((1, OUT_PAD), np.float32)
    fcb[0, :N_CLASSES] = np.asarray(b3)

    savg = np.zeros((batch_tile, bh - 7), np.float32)
    for b in range(batch_tile):
        for p in range(oh2):
            savg[b, b * h + 2 * p] = 1.0

    bf16 = jnp.bfloat16
    return dict(
        c1w=jnp.asarray(band1, bf16), c1b=jnp.asarray(c1b),
        c2w=jnp.asarray(band2, bf16), c2b=jnp.asarray(c2b),
        fcw=jnp.asarray(fcw, bf16), fcb=jnp.asarray(fcb),
        savg=jnp.asarray(savg),
        dims=(oh1, ow1, ph, pw, oh2, ow2, half),
    )


# ------------------------------- forward wrapper ------------------------------

def make_forward(h, w, kp, batch_tile=BATCH_TILE):
    oh1, ow1, ph, pw, oh2, ow2, half = kp["dims"]
    bh = batch_tile * h
    kernel = functools.partial(_fused_forward_kernel, bh=bh, half=half)

    def forward(x_nchw):
        n = x_nchw.shape[0]
        n_pad = ((n + batch_tile - 1) // batch_tile) * batch_tile
        # NCHW -> NHWC -> stacked [N*H, W*Cin] lane-dense layout (pure XLA glue;
        # negligible at 16x16 — accept NHWC directly if H/W grow).
        x = jnp.transpose(x_nchw, (0, 2, 3, 1)).reshape(n, h, w * C_IN)
        if n_pad != n:
            x = jnp.concatenate(
                [x, jnp.zeros((n_pad - n, h, w * C_IN), x.dtype)], axis=0)
        x = x.reshape(n_pad * h, w * C_IN).astype(jnp.bfloat16)

        out = pl.pallas_call(
            kernel,
            out_shape=jax.ShapeDtypeStruct((n_pad, OUT_PAD), jnp.float32),
            grid=(n_pad // batch_tile,),
            in_specs=[
                pl.BlockSpec((bh, w * C_IN), lambda i: (i, 0)),               # x batch tile
                # Grid-invariant operands (constant index maps => DMA'd once).
                pl.BlockSpec((3, w * C_IN, 2 * half), lambda i: (0, 0, 0)),    # conv1 bands
                pl.BlockSpec((1, 2 * half), lambda i: (0, 0)),                 # conv1 bias
                pl.BlockSpec((3, half, ow2 * C2), lambda i: (0, 0, 0)),        # conv2 bands
                pl.BlockSpec((1, ow2 * C2), lambda i: (0, 0)),                 # conv2 bias
                pl.BlockSpec((ow2 * C2, OUT_PAD), lambda i: (0, 0)),           # avg+fc weight
                pl.BlockSpec((batch_tile, bh - 7), lambda i: (0, 0)),          # row-sum selector
                pl.BlockSpec((1, OUT_PAD), lambda i: (0, 0)),                  # fc bias (padded)
            ],
            out_specs=pl.BlockSpec((batch_tile, OUT_PAD), lambda i: (i, 0)),
            compiler_params=pltpu.CompilerParams(
                dimension_semantics=("parallel",)),
        )(x, kp["c1w"], kp["c1b"], kp["c2w"], kp["c2b"],
          kp["fcw"], kp["savg"], kp["fcb"])
        return out[:n, :N_CLASSES]

    return jax.jit(forward)


# ------------------------------ pure-JAX reference ----------------------------

def _reference_forward(x_nchw, params):
    w1, b1, w2, b2, w3, b3 = params
    x = jnp.transpose(x_nchw, (0, 2, 3, 1))
    k1 = jnp.transpose(w1, (2, 3, 1, 0))                      # OIHW -> HWIO
    y = jax.lax.conv_general_dilated(x, k1, (1, 1), "VALID",
                                     dimension_numbers=("NHWC", "HWIO", "NHWC")) + b1
    y = jnp.maximum(y, 0.0)
    y = jax.lax.reduce_window(y, -jnp.inf, jax.lax.max,
                              (1, 2, 2, 1), (1, 2, 2, 1), "VALID")
    k2 = jnp.transpose(w2, (2, 3, 1, 0))
    y = jax.lax.conv_general_dilated(y, k2, (1, 1), "VALID",
                                     dimension_numbers=("NHWC", "HWIO", "NHWC")) + b2
    y = jnp.maximum(y, 0.0)
    pooled = jnp.mean(y, axis=(1, 2))
    return pooled @ w3.T + b3


if __name__ == "__main__":
    H = W = 16
    N = 32                                   # 4 grid steps of BATCH_TILE=8 images
    key = jax.random.PRNGKey(0)
    kx, kparam = jax.random.split(key)
    x = jax.random.normal(kx, (N, C_IN, H, W), jnp.float32)    # NCHW, like PyTorch
    params = init_params(kparam)

    kp = prepare_kernel_params(params, H, W, BATCH_TILE)
    forward = make_forward(H, W, kp, BATCH_TILE)

    out = forward(x)
    jax.block_until_ready(out)
    assert out.shape == (N, N_CLASSES) and out.dtype == jnp.float32

    ref = _reference_forward(x, params)
    assert bool(jnp.allclose(out, ref, atol=5e-2, rtol=5e-2)), (out, ref)
    print("KERNEL_OK")
</pallas_src>

<mosaic_0001>
module attributes {stable_mosaic.version = 11 : i64} {
  func.func @_fused_forward_kernel(%arg0: i32, %arg1: memref<128x48xbf16, #tpu.memory_space<vmem>>, %arg2: memref<3x48x256xbf16, #tpu.memory_space<vmem>>, %arg3: memref<1x256xf32, #tpu.memory_space<vmem>>, %arg4: memref<3x128x160xbf16, #tpu.memory_space<vmem>>, %arg5: memref<1x160xf32, #tpu.memory_space<vmem>>, %arg6: memref<160x128xbf16, #tpu.memory_space<vmem>>, %arg7: memref<8x121xf32, #tpu.memory_space<vmem>>, %arg8: memref<1x128xf32, #tpu.memory_space<vmem>>, %arg9: memref<8x128xf32, #tpu.memory_space<vmem>>) attributes {dimension_semantics = [#tpu.dimension_semantics<parallel>], iteration_bounds = array<i64: 4>, scalar_prefetch = 0 : i64, scratch_operands = 0 : i64, tpu.core_type = #tpu.core_type<tc>, window_params = [{transform_indices = @transform_0, window_bounds = array<i64: 128, 48>}, {pipeline_mode = #tpu.pipeline_mode<synchronous>, transform_indices = @transform_1, window_bounds = array<i64: 3, 48, 256>}, {pipeline_mode = #tpu.pipeline_mode<synchronous>, transform_indices = @transform_2, window_bounds = array<i64: 1, 256>}, {pipeline_mode = #tpu.pipeline_mode<synchronous>, transform_indices = @transform_3, window_bounds = array<i64: 3, 128, 160>}, {pipeline_mode = #tpu.pipeline_mode<synchronous>, transform_indices = @transform_4, window_bounds = array<i64: 1, 160>}, {pipeline_mode = #tpu.pipeline_mode<synchronous>, transform_indices = @transform_5, window_bounds = array<i64: 160, 128>}, {pipeline_mode = #tpu.pipeline_mode<synchronous>, transform_indices = @transform_6, window_bounds = array<i64: 8, 121>}, {pipeline_mode = #tpu.pipeline_mode<synchronous>, transform_indices = @transform_7, window_bounds = array<i64: 1, 128>}, {transform_indices = @transform_8, window_bounds = array<i64: 8, 128>}]} {
    %c0 = arith.constant 0 : index
    %c0_0 = arith.constant 0 : index
    %0 = vector.load %arg1[%c0, %c0_0] : memref<128x48xbf16, #tpu.memory_space<vmem>>, vector<128x48xbf16>
    %1 = vector.extract_strided_slice %0 {offsets = [0, 0], sizes = [126, 48], strides = [1, 1]} : vector<128x48xbf16> to vector<126x48xbf16>
    %c0_1 = arith.constant 0 : index
    %c0_2 = arith.constant 0 : index
    %c0_3 = arith.constant 0 : index
    %2 = vector.load %arg2[%c0_1, %c0_2, %c0_3] : memref<3x48x256xbf16, #tpu.memory_space<vmem>>, vector<1x48x256xbf16>
    %3 = vector.shape_cast %2 : vector<1x48x256xbf16> to vector<48x256xbf16>
    %cst = arith.constant dense<0.000000e+00> : vector<126x256xf32>
    %4 = tpu.matmul %1, %3, %cst {dimension_numbers = #tpu.dot_dimension_numbers<[1], [0], [0], [1], [0, 0, 1, 1], [], []>} : vector<126x48xbf16>, vector<48x256xbf16>, vector<126x256xf32> -> vector<126x256xf32>
    %5 = vector.extract_strided_slice %0 {offsets = [1, 0], sizes = [126, 48], strides = [1, 1]} : vector<128x48xbf16> to vector<126x48xbf16>
    %c1 = arith.constant 1 : index
    %c0_4 = arith.constant 0 : index
    %c0_5 = arith.constant 0 : index
    %6 = vector.load %arg2[%c1, %c0_4, %c0_5] : memref<3x48x256xbf16, #tpu.memory_space<vmem>>, vector<1x48x256xbf16>
    %7 = vector.shape_cast %6 : vector<1x48x256xbf16> to vector<48x256xbf16>
    %cst_6 = arith.constant dense<0.000000e+00> : vector<126x256xf32>
    %8 = tpu.matmul %5, %7, %cst_6 {dimension_numbers = #tpu.dot_dimension_numbers<[1], [0], [0], [1], [0, 0, 1, 1], [], []>} : vector<126x48xbf16>, vector<48x256xbf16>, vector<126x256xf32> -> vector<126x256xf32>
    %9 = arith.addf %4, %8 : vector<126x256xf32>
    %10 = vector.extract_strided_slice %0 {offsets = [2, 0], sizes = [126, 48], strides = [1, 1]} : vector<128x48xbf16> to vector<126x48xbf16>
    %c2 = arith.constant 2 : index
    %c0_7 = arith.constant 0 : index
    %c0_8 = arith.constant 0 : index
    %11 = vector.load %arg2[%c2, %c0_7, %c0_8] : memref<3x48x256xbf16, #tpu.memory_space<vmem>>, vector<1x48x256xbf16>
    %12 = vector.shape_cast %11 : vector<1x48x256xbf16> to vector<48x256xbf16>
    %cst_9 = arith.constant dense<0.000000e+00> : vector<126x256xf32>
    %13 = tpu.matmul %10, %12, %cst_9 {dimension_numbers = #tpu.dot_dimension_numbers<[1], [0], [0], [1], [0, 0, 1, 1], [], []>} : vector<126x48xbf16>, vector<48x256xbf16>, vector<126x256xf32> -> vector<126x256xf32>
    %14 = arith.addf %9, %13 : vector<126x256xf32>
    %c0_10 = arith.constant 0 : index
    %c0_11 = arith.constant 0 : index
    %15 = vector.load %arg3[%c0_10, %c0_11] : memref<1x256xf32, #tpu.memory_space<vmem>>, vector<1x256xf32>
    %16 = vector.broadcast %15 : vector<1x256xf32> to vector<126x256xf32>
    %17 = arith.addf %14, %16 : vector<126x256xf32>
    %cst_12 = arith.constant 0.000000e+00 : f32
    %18 = vector.broadcast %cst_12 : f32 to vector<126x256xf32>
    %19 = arith.maximumf %17, %18 : vector<126x256xf32>
    %20 = vector.extract_strided_slice %19 {offsets = [0, 0], sizes = [125, 256], strides = [1, 1]} : vector<126x256xf32> to vector<125x256xf32>
    %21 = vector.extract_strided_slice %19 {offsets = [1, 0], sizes = [125, 256], strides = [1, 1]} : vector<126x256xf32> to vector<125x256xf32>
    %22 = arith.maximumf %20, %21 : vector<125x256xf32>
    %23 = vector.extract_strided_slice %22 {offsets = [0, 0], sizes = [125, 128], strides = [1, 1]} : vector<125x256xf32> to vector<125x128xf32>
    %24 = vector.extract_strided_slice %22 {offsets = [0, 128], sizes = [125, 128], strides = [1, 1]} : vector<125x256xf32> to vector<125x128xf32>
    %25 = arith.maximumf %23, %24 : vector<125x128xf32>
    %26 = arith.truncf %25 : vector<125x128xf32> to vector<125x128xbf16>
    %27 = vector.extract_strided_slice %26 {offsets = [0, 0], sizes = [121, 128], strides = [1, 1]} : vector<125x128xbf16> to vector<121x128xbf16>
    %c0_13 = arith.constant 0 : index
    %c0_14 = arith.constant 0 : index
    %c0_15 = arith.constant 0 : index
    %28 = vector.load %arg4[%c0_13, %c0_14, %c0_15] : memref<3x128x160xbf16, #tpu.memory_space<vmem>>, vector<1x128x160xbf16>
    %29 = vector.shape_cast %28 : vector<1x128x160xbf16> to vector<128x160xbf16>
    %cst_16 = arith.constant dense<0.000000e+00> : vector<121x160xf32>
    %30 = tpu.matmul %27, %29, %cst_16 {dimension_numbers = #tpu.dot_dimension_numbers<[1], [0], [0], [1], [0, 0, 1, 1], [], []>} : vector<121x128xbf16>, vector<128x160xbf16>, vector<121x160xf32> -> vector<121x160xf32>
    %31 = vector.extract_strided_slice %26 {offsets = [2, 0], sizes = [121, 128], strides = [1, 1]} : vector<125x128xbf16> to vector<121x128xbf16>
    %c1_17 = arith.constant 1 : index
    %c0_18 = arith.constant 0 : index
    %c0_19 = arith.constant 0 : index
    %32 = vector.load %arg4[%c1_17, %c0_18, %c0_19] : memref<3x128x160xbf16, #tpu.memory_space<vmem>>, vector<1x128x160xbf16>
    %33 = vector.shape_cast %32 : vector<1x128x160xbf16> to vector<128x160xbf16>
    %cst_20 = arith.constant dense<0.000000e+00> : vector<121x160xf32>
    %34 = tpu.matmul %31, %33, %cst_20 {dimension_numbers = #tpu.dot_dimension_numbers<[1], [0], [0], [1], [0, 0, 1, 1], [], []>} : vector<121x128xbf16>, vector<128x160xbf16>, vector<121x160xf32> -> vector<121x160xf32>
    %35 = arith.addf %30, %34 : vector<121x160xf32>
    %36 = vector.extract_strided_slice %26 {offsets = [4, 0], sizes = [121, 128], strides = [1, 1]} : vector<125x128xbf16> to vector<121x128xbf16>
    %c2_21 = arith.constant 2 : index
    %c0_22 = arith.constant 0 : index
    %c0_23 = arith.constant 0 : index
    %37 = vector.load %arg4[%c2_21, %c0_22, %c0_23] : memref<3x128x160xbf16, #tpu.memory_space<vmem>>, vector<1x128x160xbf16>
    %38 = vector.shape_cast %37 : vector<1x128x160xbf16> to vector<128x160xbf16>
    %cst_24 = arith.constant dense<0.000000e+00> : vector<121x160xf32>
    %39 = tpu.matmul %36, %38, %cst_24 {dimension_numbers = #tpu.dot_dimension_numbers<[1], [0], [0], [1], [0, 0, 1, 1], [], []>} : vector<121x128xbf16>, vector<128x160xbf16>, vector<121x160xf32> -> vector<121x160xf32>
    %40 = arith.addf %35, %39 : vector<121x160xf32>
    %c0_25 = arith.constant 0 : index
    %c0_26 = arith.constant 0 : index
    %41 = vector.load %arg5[%c0_25, %c0_26] : memref<1x160xf32, #tpu.memory_space<vmem>>, vector<1x160xf32>
    %42 = vector.broadcast %41 : vector<1x160xf32> to vector<121x160xf32>
    %43 = arith.addf %40, %42 : vector<121x160xf32>
    %cst_27 = arith.constant 0.000000e+00 : f32
    %44 = vector.broadcast %cst_27 : f32 to vector<121x160xf32>
    %45 = arith.maximumf %43, %44 : vector<121x160xf32>
    %46 = arith.truncf %45 : vector<121x160xf32> to vector<121x160xbf16>
    %c0_28 = arith.constant 0 : index
    %c0_29 = arith.constant 0 : index
    %47 = vector.load %arg6[%c0_28, %c0_29] : memref<160x128xbf16, #tpu.memory_space<vmem>>, vector<160x128xbf16>
    %cst_30 = arith.constant dense<0.000000e+00> : vector<121x128xf32>
    %48 = tpu.matmul %46, %47, %cst_30 {dimension_numbers = #tpu.dot_dimension_numbers<[1], [0], [0], [1], [0, 0, 1, 1], [], []>} : vector<121x160xbf16>, vector<160x128xbf16>, vector<121x128xf32> -> vector<121x128xf32>
    %c0_31 = arith.constant 0 : index
    %c0_32 = arith.constant 0 : index
    %49 = vector.load %arg7[%c0_31, %c0_32] : memref<8x121xf32, #tpu.memory_space<vmem>>, vector<8x121xf32>
    %cst_33 = arith.constant dense<0.000000e+00> : vector<8x128xf32>
    %50 = tpu.matmul %49, %48, %cst_33 {dimension_numbers = #tpu.dot_dimension_numbers<[1], [0], [0], [1], [0, 0, 1, 1], [], []>} : vector<8x121xf32>, vector<121x128xf32>, vector<8x128xf32> -> vector<8x128xf32>
    %c0_34 = arith.constant 0 : index
    %c0_35 = arith.constant 0 : index
    %51 = vector.load %arg8[%c0_34, %c0_35] : memref<1x128xf32, #tpu.memory_space<vmem>>, vector<1x128xf32>
    %52 = vector.broadcast %51 : vector<1x128xf32> to vector<8x128xf32>
    %53 = arith.addf %50, %52 : vector<8x128xf32>
    %c0_36 = arith.constant 0 : index
    %c0_37 = arith.constant 0 : index
    %54 = vector.load %arg9[%c0_36, %c0_37] : memref<8x128xf32, #tpu.memory_space<vmem>>, vector<8x128xf32>
    tpu.vector_store %arg9[%c0_36, %c0_37], %53 {strides = array<i32>} : memref<8x128xf32, #tpu.memory_space<vmem>>, vector<8x128xf32>,
    return
  }
  func.func @transform_0(%arg0: i32) -> (i32, i32) {
    %c0_i32 = arith.constant 0 : i32
    %c0_i32_0 = arith.constant 0 : i32
    return %arg0, %c0_i32 : i32, i32
  }
  func.func @transform_1(%arg0: i32) -> (i32, i32, i32) {
    %c0_i32 = arith.constant 0 : i32
    %c0_i32_0 = arith.constant 0 : i32
    %c0_i32_1 = arith.constant 0 : i32
    %c0_i32_2 = arith.constant 0 : i32
    return %c0_i32, %c0_i32_0, %c0_i32_1 : i32, i32, i32
  }
  func.func @transform_2(%arg0: i32) -> (i32, i32) {
    %c0_i32 = arith.constant 0 : i32
    %c0_i32_0 = arith.constant 0 : i32
    %c0_i32_1 = arith.constant 0 : i32
    return %c0_i32, %c0_i32_0 : i32, i32
  }
  func.func @transform_3(%arg0: i32) -> (i32, i32, i32) {
    %c0_i32 = arith.constant 0 : i32
    %c0_i32_0 = arith.constant 0 : i32
    %c0_i32_1 = arith.constant 0 : i32
    %c0_i32_2 = arith.constant 0 : i32
    return %c0_i32, %c0_i32_0, %c0_i32_1 : i32, i32, i32
  }
  func.func @transform_4(%arg0: i32) -> (i32, i32) {
    %c0_i32 = arith.constant 0 : i32
    %c0_i32_0 = arith.constant 0 : i32
    %c0_i32_1 = arith.constant 0 : i32
    return %c0_i32, %c0_i32_0 : i32, i32
  }
  func.func @transform_5(%arg0: i32) -> (i32, i32) {
    %c0_i32 = arith.constant 0 : i32
    %c0_i32_0 = arith.constant 0 : i32
    %c0_i32_1 = arith.constant 0 : i32
    return %c0_i32, %c0_i32_0 : i32, i32
  }
  func.func @transform_6(%arg0: i32) -> (i32, i32) {
    %c0_i32 = arith.constant 0 : i32
    %c0_i32_0 = arith.constant 0 : i32
    %c0_i32_1 = arith.constant 0 : i32
    return %c0_i32, %c0_i32_0 : i32, i32
  }
  func.func @transform_7(%arg0: i32) -> (i32, i32) {
    %c0_i32 = arith.constant 0 : i32
    %c0_i32_0 = arith.constant 0 : i32
    %c0_i32_1 = arith.constant 0 : i32
    return %c0_i32, %c0_i32_0 : i32, i32
  }
  func.func @transform_8(%arg0: i32) -> (i32, i32) {
    %c0_i32 = arith.constant 0 : i32
    %c0_i32_0 = arith.constant 0 : i32
    return %arg0, %c0_i32 : i32, i32
  }
}

</mosaic_0001>

<llo_original>
// kernel: forward.1
$region0: #{forward.1}
  #allocation0 [shape = 'u32[]', space=smem, size = 0x4, offset = 0x4, fixed_abs, tag = 'smem constant byte address 0x4 - core index']
  #allocation1 [shape = 'u32[144,128]{1,0:T(1,128)}', space=vmem, size = 0x12000, scoped, tag = 'internal scratch']
  %s0 = inlined_call_operand.vmem [shape: bf16[512,48], index: 0, kind: input, shape index: {}]
  %s1 = inlined_call_operand.vmem [shape: bf16[3,48,256], index: 1, kind: input, shape index: {}]
  %s2 = inlined_call_operand.vmem [shape: f32[1,256], index: 2, kind: input, shape index: {}]
  %s3 = inlined_call_operand.vmem [shape: bf16[3,128,160], index: 3, kind: input, shape index: {}]
  %s4 = inlined_call_operand.vmem [shape: f32[1,160], index: 4, kind: input, shape index: {}]
  %s5 = inlined_call_operand.vmem [shape: bf16[160,128], index: 5, kind: input, shape index: {}]
  %s6 = inlined_call_operand.vmem [shape: f32[8,121], index: 6, kind: input, shape index: {}]
  %s7 = inlined_call_operand.vmem [shape: f32[1,128], index: 7, kind: input, shape index: {}]
  %s8 = inlined_call_operand.vmem [shape: f32[32,128], index: 8, kind: output, shape index: {}]
  %s9 = sld [smem:[#allocation0]]
  $region65: #{forward.1} parent=0
    _
  %s11 = ssub.s32 1, %s9
  %s12 = scalar_select 0, %s11, %s9
  loop: start=0, step=1, limit=6
  $region2: #{forward.1} parent=0 // loop_pre_header
    _
  $region3: #{forward.1} parent=0 // loop_header
    %s14 = sphi 0, %s18
    %p15 = scmp.ge.s32.totalorder %s14, 6
    %s24 = sphi 0, %s26
    %s27 = sphi 0, %s24
    %s28 = sphi 0, %s27
    %s44 = sphi 0, %s28
    %s48 = sphi 0, %s48
    %s50 = sphi 0, %s48
    %s51 = sphi 0, %s50
    %s65 = sphi 0, %s51
    %s69 = sphi 0, %s69
    %s71 = sphi 0, %s69
    %s72 = sphi 0, %s71
    %s86 = sphi 0, %s72
    %s90 = sphi 0, %s90
    %s92 = sphi 0, %s90
    %s93 = sphi 0, %s92
    %s107 = sphi 0, %s93
    %s111 = sphi 0, %s111
    %s113 = sphi 0, %s111
    %s114 = sphi 0, %s113
    %s128 = sphi 0, %s114
    %s132 = sphi 0, %s132
    %s134 = sphi 0, %s132
    %s135 = sphi 0, %s134
    %s149 = sphi 0, %s135
    %s153 = sphi 0, %s153
    %s155 = sphi 0, %s153
    %s156 = sphi 0, %s155
    %s170 = sphi 0, %s156
    %s174 = sphi 0, %s174
    %s176 = sphi 0, %s174
    %s177 = sphi 0, %s176
    %s191 = sphi 0, %s177
    %s197 = sphi 0, %s199
    %s200 = sphi 0, %s197
    %s201 = sphi 0, %s200
    %s217 = sphi 0, %s201
  $region4: #{forward.1} parent=0 // loop_header_branch
    %17 = sbr.rel (%p15) target = $region8
  $region5: #{forward.1} parent=0 // loop_body
    %s19 = ssub.s32 %s14, 1
    %s20 = ssub.s32 %s14, 2
    %s21 = sadd.s32 %s14, 1
    %s22 = ssub.s32 %s14, %s21
    %p23 = scmp.eq.s32.totalorder %s22, 0
    %s25 = sadd.s32 %s24, 1
    %s26 = scalar_select %p23, %s24, %s25
    %p29 = pneg %p23
    %p30 = scmp.eq.s32.totalorder %s14, 3
    %p31 = por %p29, %p30
    %p32 = scmp.ne.s32.totalorder %s24, %s27
    %p33 = scmp.eq.s32.totalorder %s14, 0
    %p34 = por %p32, %p33
    %p35 = scmp.ne.s32.totalorder %s24, %s27
    %p36 = scmp.eq.s32.totalorder %s19, 3
    %p37 = por %p35, %p36
    %p38 = scmp.ne.s32.totalorder %s27, %s28
    %p39 = scmp.eq.s32.totalorder %s19, 0
    %p40 = por %p38, %p39
    %p41 = scmp.ne.s32.totalorder %s27, %s28
    %p42 = scmp.eq.s32.totalorder %s20, 3
    %p43 = por %p41, %p42
    %p45 = scmp.ne.s32.totalorder %s28, %s44
    %p46 = scmp.eq.s32.totalorder %s20, 0
    %p47 = por %p45, %p46
    %s49 = sadd.s32 %s48, 1
    %p52 = scmp.eq.s32.totalorder %s14, 3
    %p53 = scmp.ne.s32.totalorder %s48, %s50
    %p54 = scmp.eq.s32.totalorder %s14, 0
    %p55 = por %p53, %p54
    %p56 = scmp.ne.s32.totalorder %s48, %s50
    %p57 = scmp.eq.s32.totalorder %s19, 3
    %p58 = por %p56, %p57
    %p59 = scmp.ne.s32.totalorder %s50, %s51
    %p60 = scmp.eq.s32.totalorder %s19, 0
    %p61 = por %p59, %p60
    %p62 = scmp.ne.s32.totalorder %s50, %s51
    %p63 = scmp.eq.s32.totalorder %s20, 3
    %p64 = por %p62, %p63
    %p66 = scmp.ne.s32.totalorder %s51, %s65
    %p67 = scmp.eq.s32.totalorder %s20, 0
    %p68 = por %p66, %p67
    %s70 = sadd.s32 %s69, 1
    %p73 = scmp.eq.s32.totalorder %s14, 3
    %p74 = scmp.ne.s32.totalorder %s69, %s71
    %p75 = scmp.eq.s32.totalorder %s14, 0
    %p76 = por %p74, %p75
    %p77 = scmp.ne.s32.totalorder %s69, %s71
    %p78 = scmp.eq.s32.totalorder %s19, 3
    %p79 = por %p77, %p78
    %p80 = scmp.ne.s32.totalorder %s71, %s72
    %p81 = scmp.eq.s32.totalorder %s19, 0
    %p82 = por %p80, %p81
    %p83 = scmp.ne.s32.totalorder %s71, %s72
    %p84 = scmp.eq.s32.totalorder %s20, 3
    %p85 = por %p83, %p84
    %p87 = scmp.ne.s32.totalorder %s72, %s86
    %p88 = scmp.eq.s32.totalorder %s20, 0
    %p89 = por %p87, %p88
    %s91 = sadd.s32 %s90, 1
    %p94 = scmp.eq.s32.totalorder %s14, 3
    %p95 = scmp.ne.s32.totalorder %s90, %s92
    %p96 = scmp.eq.s32.totalorder %s14, 0
    %p97 = por %p95, %p96
    %p98 = scmp.ne.s32.totalorder %s90, %s92
    %p99 = scmp.eq.s32.totalorder %s19, 3
    %p100 = por %p98, %p99
    %p101 = scmp.ne.s32.totalorder %s92, %s93
    %p102 = scmp.eq.s32.totalorder %s19, 0
    %p103 = por %p101, %p102
    %p104 = scmp.ne.s32.totalorder %s92, %s93
    %p105 = scmp.eq.s32.totalorder %s20, 3
    %p106 = por %p104, %p105
    %p108 = scmp.ne.s32.totalorder %s93, %s107
    %p109 = scmp.eq.s32.totalorder %s20, 0
    %p110 = por %p108, %p109
    %s112 = sadd.s32 %s111, 1
    %p115 = scmp.eq.s32.totalorder %s14, 3
    %p116 = scmp.ne.s32.totalorder %s111, %s113
    %p117 = scmp.eq.s32.totalorder %s14, 0
    %p118 = por %p116, %p117
    %p119 = scmp.ne.s32.totalorder %s111, %s113
    %p120 = scmp.eq.s32.totalorder %s19, 3
    %p121 = por %p119, %p120
    %p122 = scmp.ne.s32.totalorder %s113, %s114
    %p123 = scmp.eq.s32.totalorder %s19, 0
    %p124 = por %p122, %p123
    %p125 = scmp.ne.s32.totalorder %s113, %s114
    %p126 = scmp.eq.s32.totalorder %s20, 3
    %p127 = por %p125, %p126
    %p129 = scmp.ne.s32.totalorder %s114, %s128
    %p130 = scmp.eq.s32.totalorder %s20, 0
    %p131 = por %p129, %p130
    %s133 = sadd.s32 %s132, 1
    %p136 = scmp.eq.s32.totalorder %s14, 3
    %p137 = scmp.ne.s32.totalorder %s132, %s134
    %p138 = scmp.eq.s32.totalorder %s14, 0
    %p139 = por %p137, %p138
    %p140 = scmp.ne.s32.totalorder %s132, %s134
    %p141 = scmp.eq.s32.totalorder %s19, 3
    %p142 = por %p140, %p141
    %p143 = scmp.ne.s32.totalorder %s134, %s135
    %p144 = scmp.eq.s32.totalorder %s19, 0
    %p145 = por %p143, %p144
    %p146 = scmp.ne.s32.totalorder %s134, %s135
    %p147 = scmp.eq.s32.totalorder %s20, 3
    %p148 = por %p146, %p147
    %p150 = scmp.ne.s32.totalorder %s135, %s149
    %p151 = scmp.eq.s32.totalorder %s20, 0
    %p152 = por %p150, %p151
    %s154 = sadd.s32 %s153, 1
    %p157 = scmp.eq.s32.totalorder %s14, 3
    %p158 = scmp.ne.s32.totalorder %s153, %s155
    %p159 = scmp.eq.s32.totalorder %s14, 0
    %p160 = por %p158, %p159
    %p161 = scmp.ne.s32.totalorder %s153, %s155
    %p162 = scmp.eq.s32.totalorder %s19, 3
    %p163 = por %p161, %p162
    %p164 = scmp.ne.s32.totalorder %s155, %s156
    %p165 = scmp.eq.s32.totalorder %s19, 0
    %p166 = por %p164, %p165
    %p167 = scmp.ne.s32.totalorder %s155, %s156
    %p168 = scmp.eq.s32.totalorder %s20, 3
    %p169 = por %p167, %p168
    %p171 = scmp.ne.s32.totalorder %s156, %s170
    %p172 = scmp.eq.s32.totalorder %s20, 0
    %p173 = por %p171, %p172
    %s175 = sadd.s32 %s174, 1
    %p178 = scmp.eq.s32.totalorder %s14, 3
    %p179 = scmp.ne.s32.totalorder %s174, %s176
    %p180 = scmp.eq.s32.totalorder %s14, 0
    %p181 = por %p179, %p180
    %p182 = scmp.ne.s32.totalorder %s174, %s176
    %p183 = scmp.eq.s32.totalorder %s19, 3
    %p184 = por %p182, %p183
    %p185 = scmp.ne.s32.totalorder %s176, %s177
    %p186 = scmp.eq.s32.totalorder %s19, 0
    %p187 = por %p185, %p186
    %p188 = scmp.ne.s32.totalorder %s176, %s177
    %p189 = scmp.eq.s32.totalorder %s20, 3
    %p190 = por %p188, %p189
    %p192 = scmp.ne.s32.totalorder %s177, %s191
    %p193 = scmp.eq.s32.totalorder %s20, 0
    %p194 = por %p192, %p193
    %s195 = ssub.s32 %s14, %s21
    %p196 = scmp.eq.s32.totalorder %s195, 0
    %s198 = sadd.s32 %s197, 1
    %s199 = scalar_select %p196, %s197, %s198
    %p202 = pneg %p196
    %p203 = scmp.eq.s32.totalorder %s14, 3
    %p204 = por %p202, %p203
    %p205 = scmp.ne.s32.totalorder %s197, %s200
    %p206 = scmp.eq.s32.totalorder %s14, 0
    %p207 = por %p205, %p206
    %p208 = scmp.ne.s32.totalorder %s197, %s200
    %p209 = scmp.eq.s32.totalorder %s19, 3
    %p210 = por %p208, %p209
    %p211 = scmp.ne.s32.totalorder %s200, %s201
    %p212 = scmp.eq.s32.totalorder %s19, 0
    %p213 = por %p211, %p212
    %p214 = scmp.ne.s32.totalorder %s200, %s201
    %p215 = scmp.eq.s32.totalorder %s20, 3
    %p216 = por %p214, %p215
    %p218 = scmp.ne.s32.totalorder %s201, %s217
    %p219 = scmp.eq.s32.totalorder %s20, 0
    %p220 = por %p218, %p219
    %p221 = scmp.le.s32.totalorder 1, %s14
    %p222 = scmp.lt.s32.totalorder %s14, 5
    %p223 = pnand %p221, %p222
    %p224 = pneg %p223
    // Predicated region
    $region9: #{forward.1} parent=5 // pred_check
      _
    $region10: #{forward.1} parent=5 // pred_check_branch
      %226 = sbr.rel (%p223) target = $region12
    $region11: #{forward.1} parent=5 // pred_region
      %s227 = ssub.s32 %s14, 1
      // Predicated region
      $region13: #{forward.1} parent=11 // pred_check
        %p228 = pneg %p61
      $region14: #{forward.1} parent=11 // pred_check_branch
        %230 = sbr.rel (%p228) target = $region16
      $region15: #{forward.1} parent=11 // pred_region
        _
      $region16: #{forward.1} parent=11 // pred_fallthru
        _
      // Predicated region
      $region17: #{forward.1} parent=11 // pred_check
        %p231 = pneg %p82
      $region18: #{forward.1} parent=11 // pred_check_branch
        %233 = sbr.rel (%p231) target = $region20
      $region19: #{forward.1} parent=11 // pred_region
        _
      $region20: #{forward.1} parent=11 // pred_fallthru
        _
      // Predicated region
      $region21: #{forward.1} parent=11 // pred_check
        %p234 = pneg %p103
      $region22: #{forward.1} parent=11 // pred_check_branch
        %236 = sbr.rel (%p234) target = $region24
      $region23: #{forward.1} parent=11 // pred_region
        _
      $region24: #{forward.1} parent=11 // pred_fallthru
        _
      // Predicated region
      $region25: #{forward.1} parent=11 // pred_check
        %p237 = pneg %p124
      $region26: #{forward.1} parent=11 // pred_check_branch
        %239 = sbr.rel (%p237) target = $region28
      $region27: #{forward.1} parent=11 // pred_region
        _
      $region28: #{forward.1} parent=11 // pred_fallthru
        _
      // Predicated region
      $region29: #{forward.1} parent=11 // pred_check
        %p240 = pneg %p145
      $region30: #{forward.1} parent=11 // pred_check_branch
        %242 = sbr.rel (%p240) target = $region32
      $region31: #{forward.1} parent=11 // pred_region
        _
      $region32: #{forward.1} parent=11 // pred_fallthru
        _
      // Predicated region
      $region33: #{forward.1} parent=11 // pred_check
        %p243 = pneg %p166
      $region34: #{forward.1} parent=11 // pred_check_branch
        %245 = sbr.rel (%p243) target = $region36
      $region35: #{forward.1} parent=11 // pred_region
        _
      $region36: #{forward.1} parent=11 // pred_fallthru
        _
      // Predicated region
      $region37: #{forward.1} parent=11 // pred_check
        %p246 = pneg %p187
      $region38: #{forward.1} parent=11 // pred_check_branch
        %248 = sbr.rel (%p246) target = $region40
      $region39: #{forward.1} parent=11 // pred_region
        _
      $region40: #{forward.1} parent=11 // pred_fallthru
        _
    $region12: #{forward.1} parent=5 // pred_fallthru
      _
    %p249 = scmp.lt.s32.totalorder %s14, 4
    // Predicated region
    $region41: #{forward.1} parent=5 // pred_check
      %p250 = pneg %p249
    $region42: #{forward.1} parent=5 // pred_check_branch
      %252 = sbr.rel (%p250) target = $region44
    $region43: #{forward.1} parent=5 // pred_region
      // Predicated region
      $region45: #{forward.1} parent=43 // pred_check
        %p253 = pneg %p34
      $region46: #{forward.1} parent=43 // pred_check_branch
        %255 = sbr.rel (%p253) target = $region48
      $region47: #{forward.1} parent=43 // pred_region
        %s256 = smul.u32 16, %s14
        %p257 = scmp.lt.s32.totalorder %s256, 63
        %s258 = scalar_select %p257, %s256, 63
        %s259 = smul.addr %s258, 4
        %s260 = scalar_lea.vmem %s0, %s259
        %s261 = smul.u32 16, %s14
      $region48: #{forward.1} parent=43 // pred_fallthru
        _
    $region44: #{forward.1} parent=5 // pred_fallthru
      _
    %p262 = scmp.le.s32.totalorder 1, %s14
    %p263 = scmp.lt.s32.totalorder %s14, 5
    %p264 = pnand %p262, %p263
    %p265 = pneg %p264
    // Predicated region
    $region49: #{forward.1} parent=5 // pred_check
      _
    $region50: #{forward.1} parent=5 // pred_check_branch
      %267 = sbr.rel (%p264) target = $region52
    $region51: #{forward.1} parent=5 // pred_region
      %s268 = ssub.s32 %s14, 1
      %s269 = smul.u32 16, %s19
      %p270 = scmp.lt.s32.totalorder %s269, 63
      %s271 = scalar_select %p270, %s269, 63
      %s272 = smul.addr %s271, 4
      %s273 = scalar_lea.vmem %s0, %s272
      %p274 = pneg %p40
      %p275 = pneg %p37
      %p276 = pneg %p61
      %p277 = pneg %p58
      %p278 = pneg %p82
      %p279 = pneg %p79
      %p280 = pneg %p103
      %p281 = pneg %p100
      %p282 = pneg %p124
      %p283 = pneg %p121
      %p284 = pneg %p145
      %p285 = pneg %p142
      %p286 = pneg %p166
      %p287 = pneg %p163
      %p288 = pneg %p187
      %p289 = pneg %p184
      %p290 = pneg %p213
      %p291 = pneg %p210
      %p292 = scmp.lt.s32.totalorder %s19, 3
      %s293 = scalar_select %p292, %s19, 3
      %s294 = smul.addr %s293, 8
      %s295 = scalar_lea.vmem %s8, %s294
      %s296 = smul.u32 16, %s19
      %p297 = scmp.lt.s32.totalorder %s296, 63
      %s298 = scalar_select %p297, %s296, 63
      %s299 = smul.addr %s298, 4
      %s300 = scalar_lea.vmem %s0, %s299
      %s301 = smul.u32 16, %s19
      %p302 = scmp.lt.s32.totalorder %s19, 3
      %s303 = scalar_select %p302, %s19, 3
      %s304 = smul.addr %s303, 8
      %s305 = scalar_lea.vmem %s8, %s304
      %v307 = vld [vmem:[%s300] sm:$0xf]
      %v308 = vld [vmem:[%s300 + $0x4] sm:$0xf]
      %v309 = vld [vmem:[%s300 + $0x8] sm:$0xf]
      %v310 = vld [vmem:[%s300 + $0xc] sm:$0xf]
      %v311 = vld [vmem:[%s300 + $0x10] sm:$0xf]
      %v312 = vld [vmem:[%s300 + $0x14] sm:$0xf]
      %v313 = vld [vmem:[%s300 + $0x18] sm:$0xf]
      %v314 = vld [vmem:[%s300 + $0x1c] sm:$0xf]
      %v315 = vld [vmem:[%s300 + $0x20] sm:$0xf]
      %v316 = vld [vmem:[%s300 + $0x24] sm:$0xf]
      %v317 = vld [vmem:[%s300 + $0x28] sm:$0xf]
      %v318 = vld [vmem:[%s300 + $0x2c] sm:$0xf]
      %v319 = vld [vmem:[%s300 + $0x30] sm:$0xf]
      %v320 = vld [vmem:[%s300 + $0x34] sm:$0xf]
      %v321 = vld [vmem:[%s300 + $0x38] sm:$0xf]
      %v322 = vld [vmem:[%s300 + $0x3c] sm:$0xf]
      %v323 = vld [vmem:[%s1] sm:$0xff]
      %v324 = vld [vmem:[%s1 + $0x8] sm:$0xff]
      %v325 = vld [vmem:[%s1 + $0x10] sm:$0xff]
      %v326 = vld [vmem:[%s1 + $0x18] sm:$0xff]
      %v327 = vld [vmem:[%s1 + $0x20] sm:$0xff]
      %v328 = vld [vmem:[%s1 + $0x28] sm:$0xff]
      %s329 = scalar_lea.vmem %s1, 48
      %v330 = vld [vmem:[%s329] sm:$0xff]
      %v331 = vld [vmem:[%s329 + $0x8] sm:$0xff]
      %v332 = vld [vmem:[%s329 + $0x10] sm:$0xff]
      %v333 = vld [vmem:[%s329 + $0x18] sm:$0xff]
      %v334 = vld [vmem:[%s329 + $0x20] sm:$0xff]
      %v335 = vld [vmem:[%s329 + $0x28] sm:$0xff]
      %v352 = vunpack.c.l.b16 %v307
      %v353 = vunpack.c.l.b16 %v308
      %v354 = vunpack.c.l.b16 %v309
      %v355 = vunpack.c.l.b16 %v310
      %v356 = vunpack.c.l.b16 %v311
      %v357 = vunpack.c.l.b16 %v312
      %v358 = vunpack.c.l.b16 %v313
      %v359 = vunpack.c.l.b16 %v314
      %v360 = vunpack.c.l.b16 %v315
      %v361 = vunpack.c.l.b16 %v316
      %v362 = vunpack.c.l.b16 %v317
      %v363 = vunpack.c.l.b16 %v318
      %v364 = vunpack.c.l.b16 %v319
      %v365 = vunpack.c.l.b16 %v320
      %v366 = vunpack.c.l.b16 %v321
      %v367 = vunpack.c.l.b16 %v322
      %v368 = vpack.c.b16 %v353, %v352
      %v369 = vpack.c.b16 %v355, %v354
      %v370 = vpack.c.b16 %v357, %v356
      %v371 = vpack.c.b16 %v359, %v358
      %v372 = vpack.c.b16 %v361, %v360
      %v373 = vpack.c.b16 %v363, %v362
      %v374 = vpack.c.b16 %v365, %v364
      %v375 = vpack.c.b16 %v367, %v366
      %vm376 = vsmask.f32 7424
      %v378 = vshrl.u32 %v368, 16
      %v380 = vshll.u32 %v368, 16
      %v382 = vrot.slane %v380, 1
      %v383 = vor.u32 %v378, %v382
      %v385 = vshll.u32 %v369, 16
      %v387 = vrot.slane %v385, 1
      %v388 = vsel %vm376, %v383, %v387
      %v389 = vshrl.u32 %v369, 16
      %v391 = vor.u32 %v389, %v387
      %v393 = vshll.u32 %v370, 16
      %v395 = vrot.slane %v393, 1
      %v396 = vsel %vm376, %v391, %v395
      %v397 = vshrl.u32 %v370, 16
      %v399 = vor.u32 %v397, %v395
      %v401 = vshll.u32 %v371, 16
      %v403 = vrot.slane %v401, 1
      %v404 = vsel %vm376, %v399, %v403
      %v405 = vshrl.u32 %v371, 16
      %v407 = vor.u32 %v405, %v403
      %v409 = vshll.u32 %v372, 16
      %v411 = vrot.slane %v409, 1
      %v412 = vsel %vm376, %v407, %v411
      %v413 = vshrl.u32 %v372, 16
      %v415 = vor.u32 %v413, %v411
      %v417 = vshll.u32 %v373, 16
      %v419 = vrot.slane %v417, 1
      %v420 = vsel %vm376, %v415, %v419
      %v421 = vshrl.u32 %v373, 16
      %v423 = vor.u32 %v421, %v419
      %v425 = vshll.u32 %v374, 16
      %v427 = vrot.slane %v425, 1
      %v428 = vsel %vm376, %v423, %v427
      %v429 = vshrl.u32 %v374, 16
      %v431 = vor.u32 %v429, %v427
      %v433 = vshll.u32 %v375, 16
      %v435 = vrot.slane %v433, 1
      %v436 = vsel %vm376, %v431, %v435
      %v437 = vshrl.u32 %v375, 16
      %v439 = vor.u32 %v437, %v435
      %v446 = vunpack.c.l.b16 %v330
      %v447 = vunpack.c.h.b16 %v330
      %v448 = vunpack.c.l.b16 %v331
      %v449 = vunpack.c.h.b16 %v331
      %v450 = vunpack.c.l.b16 %v332
      %v451 = vunpack.c.h.b16 %v332
      %v452 = vunpack.c.l.b16 %v333
      %v453 = vunpack.c.h.b16 %v333
      %v454 = vunpack.c.l.b16 %v334
      %v455 = vunpack.c.h.b16 %v334
      %v456 = vunpack.c.l.b16 %v335
      %v457 = vunpack.c.h.b16 %v335
      %v458 = vpack.c.b16 %v448, %v446
      %v459 = vpack.c.b16 %v449, %v447
      %v460 = vpack.c.b16 %v452, %v450
      %v461 = vpack.c.b16 %v453, %v451
      %v462 = vpack.c.b16 %v456, %v454
      %v463 = vpack.c.b16 %v457, %v455
      %vm470 = vcmask 392192
      %v472 = vsel %vm470, %v388, 0
      %v475 = vsel %vm470, %v396, 0
      %v478 = vsel %vm470, %v404, 0
      %v481 = vsel %vm470, %v412, 0
      %v484 = vsel %vm470, %v420, 0
      %v487 = vsel %vm470, %v428, 0
      %v490 = vsel %vm470, %v436, 0
      %v493 = vsel %vm470, %v439, 0
      %495 = vmatprep.subr.bf16.mxu0 %v459
      %496 = vmatpush1.bf16.msra.mxu0 %v458
      %497 = vmatprep.subr.bf16.mxu0 %v461
      %498 = vmatpush1.bf16.msra.mxu0 %v460
      %499 = vmatprep.subr.bf16.mxu0 %v463
      %500 = vmatpush1.bf16.msra.mxu0 %v462
      %501 = vmatprep.subr.bf16.mxu0 0
      %502 = vmatpush1.bf16.msra.mxu0 0
      %503 = vmatprep.subr.bf16.mxu0 0
      %504 = vmatpush1.bf16.msra.mxu0 0
      %505 = vmatprep.subr.bf16.mxu0 0
      %506 = vmatpush1.bf16.msra.mxu0 0
      %507 = vmatprep.subr.bf16.mxu0 0
      %508 = vmatpush1.bf16.msra.mxu0 0
      %509 = vmatprep.subr.bf16.mxu0 0
      %510 = vmatpush1.bf16.msra.mxu0 0
      %511 = vmatprep.subr.bf16.mxu0 0
      %512 = vmatpush1.bf16.msra.mxu0 0
      %513 = vmatprep.subr.bf16.mxu0 0
      %514 = vmatpush1.bf16.msra.mxu0 0
      %515 = vmatprep.subr.bf16.mxu0 0
      %516 = vmatpush1.bf16.msra.mxu0 0
      %517 = vmatprep.subr.bf16.mxu0 0
      %518 = vmatpush1.bf16.msra.mxu0 0
      %519 = vmatprep.subr.bf16.mxu0 0
      %520 = vmatpush1.bf16.msra.mxu0 0
      %521 = vmatprep.subr.bf16.mxu0 0
      %522 = vmatpush1.bf16.msra.mxu0 0
      %523 = vmatprep.subr.bf16.mxu0 0
      %524 = vmatpush1.bf16.msra.mxu0 0
      %525 = vmatprep.subr.bf16.mxu0 0
      %526 = vmatpush1.bf16.msra.mxu0 0
      %527 = vmatprep.mubr.bf16.mxu0 0
      %528 = vmatmul.mubr.bf16.gmra.mrb[0].mxu0 %v472
      %v529 = vpop.f32.mrb[0].mxu0
      %v530 = vadd.f32 0.0, %v529
      %v531 = vpop.f32.mrb[0].mxu0
      %v532 = vadd.f32 0.0, %v531
      %v533 = vpop.f32.mrb[0].mxu0
      %v534 = vadd.f32 0.0, %v533
      %v535 = vpop.f32.mrb[0].mxu0
      %v536 = vadd.f32 0.0, %v535
      %537 = vmatprep.mubr.bf16.mxu0 0
      %538 = vmatmul.mubr.bf16.gmra.mrb[0].mxu0 %v475
      %v539 = vpop.f32.mrb[0].mxu0
      %v540 = vadd.f32 0.0, %v539
      %v541 = vpop.f32.mrb[0].mxu0
      %v542 = vadd.f32 0.0, %v541
      %v543 = vpop.f32.mrb[0].mxu0
      %v544 = vadd.f32 0.0, %v543
      %v545 = vpop.f32.mrb[0].mxu0
      %v546 = vadd.f32 0.0, %v545
      %547 = vmatprep.mubr.bf16.mxu0 0
      %548 = vmatmul.mubr.bf16.gmra.mrb[0].mxu0 %v478
      %v549 = vpop.f32.mrb[0].mxu0
      %v550 = vadd.f32 0.0, %v549
      %v551 = vpop.f32.mrb[0].mxu0
      %v552 = vadd.f32 0.0, %v551
      %v553 = vpop.f32.mrb[0].mxu0
      %v554 = vadd.f32 0.0, %v553
      %v555 = vpop.f32.mrb[0].mxu0
      %v556 = vadd.f32 0.0, %v555
      %557 = vmatprep.mubr.bf16.mxu0 0
      %558 = vmatmul.mubr.bf16.gmra.mrb[0].mxu0 %v481
      %v559 = vpop.f32.mrb[0].mxu0
      %v560 = vadd.f32 0.0, %v559
      %v561 = vpop.f32.mrb[0].mxu0
      %v562 = vadd.f32 0.0, %v561
      %v563 = vpop.f32.mrb[0].mxu0
      %v564 = vadd.f32 0.0, %v563
      %v565 = vpop.f32.mrb[0].mxu0
      %v566 = vadd.f32 0.0, %v565
      %567 = vmatprep.mubr.bf16.mxu0 0
      %568 = vmatmul.mubr.bf16.gmra.mrb[0].mxu0 %v484
      %v569 = vpop.f32.mrb[0].mxu0
      %v570 = vadd.f32 0.0, %v569
      %v571 = vpop.f32.mrb[0].mxu0
      %v572 = vadd.f32 0.0, %v571
      %v573 = vpop.f32.mrb[0].mxu0
      %v574 = vadd.f32 0.0, %v573
      %v575 = vpop.f32.mrb[0].mxu0
      %v576 = vadd.f32 0.0, %v575
      %577 = vmatprep.mubr.bf16.mxu0 0
      %578 = vmatmul.mubr.bf16.gmra.mrb[0].mxu0 %v487
      %v579 = vpop.f32.mrb[0].mxu0
      %v580 = vadd.f32 0.0, %v579
      %v581 = vpop.f32.mrb[0].mxu0
      %v582 = vadd.f32 0.0, %v581
      %v583 = vpop.f32.mrb[0].mxu0
      %v584 = vadd.f32 0.0, %v583
      %v585 = vpop.f32.mrb[0].mxu0
      %v586 = vadd.f32 0.0, %v585
      %587 = vmatprep.mubr.bf16.mxu0 0
      %588 = vmatmul.mubr.bf16.gmra.mrb[0].mxu0 %v490
      %v589 = vpop.f32.mrb[0].mxu0
      %v590 = vadd.f32 0.0, %v589
      %v591 = vpop.f32.mrb[0].mxu0
      %v592 = vadd.f32 0.0, %v591
      %v593 = vpop.f32.mrb[0].mxu0
      %v594 = vadd.f32 0.0, %v593
      %v595 = vpop.f32.mrb[0].mxu0
      %v596 = vadd.f32 0.0, %v595
      %597 = vmatprep.mubr.bf16.mxu0 0
      %598 = vmatmul.mubr.bf16.gmra.mrb[0].mxu0 %v493
      %v599 = vpop.f32.mrb[0].mxu0
      %v600 = vadd.f32 0.0, %v599
      %v601 = vpop.f32.mrb[0].mxu0
      %v602 = vadd.f32 0.0, %v601
      %v603 = vpop.f32.mrb[0].mxu0
      %v604 = vadd.f32 0.0, %v603
      %v605 = vpop.f32.mrb[0].mxu0
      %v606 = vadd.f32 0.0, %v605
      %607 = vdwg.mxu0
      %v614 = vunpack.c.l.b16 %v323
      %v615 = vunpack.c.h.b16 %v323
      %v616 = vunpack.c.l.b16 %v324
      %v617 = vunpack.c.h.b16 %v324
      %v618 = vunpack.c.l.b16 %v325
      %v619 = vunpack.c.h.b16 %v325
      %v620 = vunpack.c.l.b16 %v326
      %v621 = vunpack.c.h.b16 %v326
      %v622 = vunpack.c.l.b16 %v327
      %v623 = vunpack.c.h.b16 %v327
      %v624 = vunpack.c.l.b16 %v328
      %v625 = vunpack.c.h.b16 %v328
      %v626 = vpack.c.b16 %v616, %v614
      %v627 = vpack.c.b16 %v617, %v615
      %v628 = vpack.c.b16 %v620, %v618
      %v629 = vpack.c.b16 %v621, %v619
      %v630 = vpack.c.b16 %v624, %v622
      %v631 = vpack.c.b16 %v625, %v623
      %v638 = vsel %vm470, %v368, 0
      %v640 = vsel %vm470, %v369, 0
      %v642 = vsel %vm470, %v370, 0
      %v644 = vsel %vm470, %v371, 0
      %v646 = vsel %vm470, %v372, 0
      %v648 = vsel %vm470, %v373, 0
      %v650 = vsel %vm470, %v374, 0
      %v652 = vsel %vm470, %v375, 0
      %654 = vmatprep.subr.bf16.mxu0 %v627
      %655 = vmatpush1.bf16.msra.mxu0 %v626
      %656 = vmatprep.subr.bf16.mxu0 %v629
      %657 = vmatpush1.bf16.msra.mxu0 %v628
      %658 = vmatprep.subr.bf16.mxu0 %v631
      %659 = vmatpush1.bf16.msra.mxu0 %v630
      %660 = vmatprep.subr.bf16.mxu0 0
      %661 = vmatpush1.bf16.msra.mxu0 0
      %662 = vmatprep.subr.bf16.mxu0 0
      %663 = vmatpush1.bf16.msra.mxu0 0
      %664 = vmatprep.subr.bf16.mxu0 0
      %665 = vmatpush1.bf16.msra.mxu0 0
      %666 = vmatprep.subr.bf16.mxu0 0
      %667 = vmatpush1.bf16.msra.mxu0 0
      %668 = vmatprep.subr.bf16.mxu0 0
      %669 = vmatpush1.bf16.msra.mxu0 0
      %670 = vmatprep.subr.bf16.mxu0 0
      %671 = vmatpush1.bf16.msra.mxu0 0
      %672 = vmatprep.subr.bf16.mxu0 0
      %673 = vmatpush1.bf16.msra.mxu0 0
      %674 = vmatprep.subr.bf16.mxu0 0
      %675 = vmatpush1.bf16.msra.mxu0 0
      %676 = vmatprep.subr.bf16.mxu0 0
      %677 = vmatpush1.bf16.msra.mxu0 0
      %678 = vmatprep.subr.bf16.mxu0 0
      %679 = vmatpush1.bf16.msra.mxu0 0
      %680 = vmatprep.subr.bf16.mxu0 0
      %681 = vmatpush1.bf16.msra.mxu0 0
      %682 = vmatprep.subr.bf16.mxu0 0
      %683 = vmatpush1.bf16.msra.mxu0 0
      %684 = vmatprep.subr.bf16.mxu0 0
      %685 = vmatpush1.bf16.msra.mxu0 0
      %686 = vmatprep.mubr.bf16.mxu0 0
      %687 = vmatmul.mubr.bf16.gmra.mrb[0].mxu0 %v638
      %v688 = vpop.f32.mrb[0].mxu0
      %v689 = vadd.f32 %v530, %v688
      %v690 = vpop.f32.mrb[0].mxu0
      %v691 = vadd.f32 %v532, %v690
      %v692 = vpop.f32.mrb[0].mxu0
      %v693 = vadd.f32 %v534, %v692
      %v694 = vpop.f32.mrb[0].mxu0
      %v695 = vadd.f32 %v536, %v694
      %696 = vmatprep.mubr.bf16.mxu0 0
      %697 = vmatmul.mubr.bf16.gmra.mrb[0].mxu0 %v640
      %v698 = vpop.f32.mrb[0].mxu0
      %v699 = vadd.f32 %v540, %v698
      %v700 = vpop.f32.mrb[0].mxu0
      %v701 = vadd.f32 %v542, %v700
      %v702 = vpop.f32.mrb[0].mxu0
      %v703 = vadd.f32 %v544, %v702
      %v704 = vpop.f32.mrb[0].mxu0
      %v705 = vadd.f32 %v546, %v704
      %706 = vmatprep.mubr.bf16.mxu0 0
      %707 = vmatmul.mubr.bf16.gmra.mrb[0].mxu0 %v642
      %v708 = vpop.f32.mrb[0].mxu0
      %v709 = vadd.f32 %v550, %v708
      %v710 = vpop.f32.mrb[0].mxu0
      %v711 = vadd.f32 %v552, %v710
      %v712 = vpop.f32.mrb[0].mxu0
      %v713 = vadd.f32 %v554, %v712
      %v714 = vpop.f32.mrb[0].mxu0
      %v715 = vadd.f32 %v556, %v714
      %716 = vmatprep.mubr.bf16.mxu0 0
      %717 = vmatmul.mubr.bf16.gmra.mrb[0].mxu0 %v644
      %v718 = vpop.f32.mrb[0].mxu0
      %v719 = vadd.f32 %v560, %v718
      %v720 = vpop.f32.mrb[0].mxu0
      %v721 = vadd.f32 %v562, %v720
      %v722 = vpop.f32.mrb[0].mxu0
      %v723 = vadd.f32 %v564, %v722
      %v724 = vpop.f32.mrb[0].mxu0
      %v725 = vadd.f32 %v566, %v724
      %726 = vmatprep.mubr.bf16.mxu0 0
      %727 = vmatmul.mubr.bf16.gmra.mrb[0].mxu0 %v646
      %v728 = vpop.f32.mrb[0].mxu0
      %v729 = vadd.f32 %v570, %v728
      %v730 = vpop.f32.mrb[0].mxu0
      %v731 = vadd.f32 %v572, %v730
      %v732 = vpop.f32.mrb[0].mxu0
      %v733 = vadd.f32 %v574, %v732
      %v734 = vpop.f32.mrb[0].mxu0
      %v735 = vadd.f32 %v576, %v734
      %736 = vmatprep.mubr.bf16.mxu0 0
      %737 = vmatmul.mubr.bf16.gmra.mrb[0].mxu0 %v648
      %v738 = vpop.f32.mrb[0].mxu0
      %v739 = vadd.f32 %v580, %v738
      %v740 = vpop.f32.mrb[0].mxu0
      %v741 = vadd.f32 %v582, %v740
      %v742 = vpop.f32.mrb[0].mxu0
      %v743 = vadd.f32 %v584, %v742
      %v744 = vpop.f32.mrb[0].mxu0
      %v745 = vadd.f32 %v586, %v744
      %746 = vmatprep.mubr.bf16.mxu0 0
      %747 = vmatmul.mubr.bf16.gmra.mrb[0].mxu0 %v650
      %v748 = vpop.f32.mrb[0].mxu0
      %v749 = vadd.f32 %v590, %v748
      %v750 = vpop.f32.mrb[0].mxu0
      %v751 = vadd.f32 %v592, %v750
      %v752 = vpop.f32.mrb[0].mxu0
      %v753 = vadd.f32 %v594, %v752
      %v754 = vpop.f32.mrb[0].mxu0
      %v755 = vadd.f32 %v596, %v754
      %756 = vmatprep.mubr.bf16.mxu0 0
      %757 = vmatmul.mubr.bf16.gmra.mrb[0].mxu0 %v652
      %v758 = vpop.f32.mrb[0].mxu0
      %v759 = vadd.f32 %v600, %v758
      %v760 = vpop.f32.mrb[0].mxu0
      %v761 = vadd.f32 %v602, %v760
      %v762 = vpop.f32.mrb[0].mxu0
      %v763 = vadd.f32 %v604, %v762
      %v764 = vpop.f32.mrb[0].mxu0
      %v765 = vadd.f32 %v606, %v764
      %766 = vdwg.mxu0
      %s767 = scalar_lea.vmem %s1, 96
      %v768 = vld [vmem:[%s767] sm:$0xff]
      %v769 = vld [vmem:[%s767 + $0x8] sm:$0xff]
      %v770 = vld [vmem:[%s767 + $0x10] sm:$0xff]
      %v771 = vld [vmem:[%s767 + $0x18] sm:$0xff]
      %v772 = vld [vmem:[%s767 + $0x20] sm:$0xff]
      %v773 = vld [vmem:[%s767 + $0x28] sm:$0xff]
      %vm774 = vcmask 1046528
      %v775 = vrot.slane %v368, 1
      %v776 = vrot.slane %v369, 1
      %v777 = vsel %vm774, %v775, %v776
      %v778 = vrot.slane %v370, 1
      %v779 = vsel %vm774, %v776, %v778
      %v780 = vrot.slane %v371, 1
      %v781 = vsel %vm774, %v778, %v780
      %v782 = vrot.slane %v372, 1
      %v783 = vsel %vm774, %v780, %v782
      %v784 = vrot.slane %v373, 1
      %v785 = vsel %vm774, %v782, %v784
      %v786 = vrot.slane %v374, 1
      %v787 = vsel %vm774, %v784, %v786
      %v788 = vrot.slane %v375, 1
      %v789 = vsel %vm774, %v786, %v788
      %v796 = vunpack.c.l.b16 %v768
      %v797 = vunpack.c.h.b16 %v768
      %v798 = vunpack.c.l.b16 %v769
      %v799 = vunpack.c.h.b16 %v769
      %v800 = vunpack.c.l.b16 %v770
      %v801 = vunpack.c.h.b16 %v770
      %v802 = vunpack.c.l.b16 %v771
      %v803 = vunpack.c.h.b16 %v771
      %v804 = vunpack.c.l.b16 %v772
      %v805 = vunpack.c.h.b16 %v772
      %v806 = vunpack.c.l.b16 %v773
      %v807 = vunpack.c.h.b16 %v773
      %v808 = vpack.c.b16 %v798, %v796
      %v809 = vpack.c.b16 %v799, %v797
      %v810 = vpack.c.b16 %v802, %v800
      %v811 = vpack.c.b16 %v803, %v801
      %v812 = vpack.c.b16 %v806, %v804
      %v813 = vpack.c.b16 %v807, %v805
      %v821 = vsel %vm470, %v777, 0
      %v824 = vsel %vm470, %v779, 0
      %v827 = vsel %vm470, %v781, 0
      %v830 = vsel %vm470, %v783, 0
      %v833 = vsel %vm470, %v785, 0
      %v836 = vsel %vm470, %v787, 0
      %v839 = vsel %vm470, %v789, 0
      %v842 = vsel %vm470, %v788, 0
      %844 = vmatprep.subr.bf16.mxu0 %v809
      %845 = vmatpush1.bf16.msra.mxu0 %v808
      %846 = vmatprep.subr.bf16.mxu0 %v811
      %847 = vmatpush1.bf16.msra.mxu0 %v810
      %848 = vmatprep.subr.bf16.mxu0 %v813
      %849 = vmatpush1.bf16.msra.mxu0 %v812
      %850 = vmatprep.subr.bf16.mxu0 0
      %851 = vmatpush1.bf16.msra.mxu0 0
      %852 = vmatprep.subr.bf16.mxu0 0
      %853 = vmatpush1.bf16.msra.mxu0 0
      %854 = vmatprep.subr.bf16.mxu0 0
      %855 = vmatpush1.bf16.msra.mxu0 0
      %856 = vmatprep.subr.bf16.mxu0 0
      %857 = vmatpush1.bf16.msra.mxu0 0
      %858 = vmatprep.subr.bf16.mxu0 0
      %859 = vmatpush1.bf16.msra.mxu0 0
      %860 = vmatprep.subr.bf16.mxu0 0
      %861 = vmatpush1.bf16.msra.mxu0 0
      %862 = vmatprep.subr.bf16.mxu0 0
      %863 = vmatpush1.bf16.msra.mxu0 0
      %864 = vmatprep.subr.bf16.mxu0 0
      %865 = vmatpush1.bf16.msra.mxu0 0
      %866 = vmatprep.subr.bf16.mxu0 0
      %867 = vmatpush1.bf16.msra.mxu0 0
      %868 = vmatprep.subr.bf16.mxu0 0
      %869 = vmatpush1.bf16.msra.mxu0 0
      %870 = vmatprep.subr.bf16.mxu0 0
      %871 = vmatpush1.bf16.msra.mxu0 0
      %872 = vmatprep.subr.bf16.mxu0 0
      %873 = vmatpush1.bf16.msra.mxu0 0
      %874 = vmatprep.subr.bf16.mxu0 0
      %875 = vmatpush1.bf16.msra.mxu0 0
      %876 = vmatprep.mubr.bf16.mxu0 0
      %877 = vmatmul.mubr.bf16.gmra.mrb[0].mxu0 %v821
      %v878 = vpop.f32.mrb[0].mxu0
      %v879 = vadd.f32 0.0, %v878
      %v880 = vpop.f32.mrb[0].mxu0
      %v881 = vadd.f32 0.0, %v880
      %v882 = vpop.f32.mrb[0].mxu0
      %v883 = vadd.f32 0.0, %v882
      %v884 = vpop.f32.mrb[0].mxu0
      %v885 = vadd.f32 0.0, %v884
      %886 = vmatprep.mubr.bf16.mxu0 0
      %887 = vmatmul.mubr.bf16.gmra.mrb[0].mxu0 %v824
      %v888 = vpop.f32.mrb[0].mxu0
      %v889 = vadd.f32 0.0, %v888
      %v890 = vpop.f32.mrb[0].mxu0
      %v891 = vadd.f32 0.0, %v890
      %v892 = vpop.f32.mrb[0].mxu0
      %v893 = vadd.f32 0.0, %v892
      %v894 = vpop.f32.mrb[0].mxu0
      %v895 = vadd.f32 0.0, %v894
      %896 = vmatprep.mubr.bf16.mxu0 0
      %897 = vmatmul.mubr.bf16.gmra.mrb[0].mxu0 %v827
      %v898 = vpop.f32.mrb[0].mxu0
      %v899 = vadd.f32 0.0, %v898
      %v900 = vpop.f32.mrb[0].mxu0
      %v901 = vadd.f32 0.0, %v900
      %v902 = vpop.f32.mrb[0].mxu0
      %v903 = vadd.f32 0.0, %v902
      %v904 = vpop.f32.mrb[0].mxu0
      %v905 = vadd.f32 0.0, %v904
      %906 = vmatprep.mubr.bf16.mxu0 0
      %907 = vmatmul.mubr.bf16.gmra.mrb[0].mxu0 %v830
      %v908 = vpop.f32.mrb[0].mxu0
      %v909 = vadd.f32 0.0, %v908
      %v910 = vpop.f32.mrb[0].mxu0
      %v911 = vadd.f32 0.0, %v910
      %v912 = vpop.f32.mrb[0].mxu0
      %v913 = vadd.f32 0.0, %v912
      %v914 = vpop.f32.mrb[0].mxu0
      %v915 = vadd.f32 0.0, %v914
      %916 = vmatprep.mubr.bf16.mxu0 0
      %917 = vmatmul.mubr.bf16.gmra.mrb[0].mxu0 %v833
      %v918 = vpop.f32.mrb[0].mxu0
      %v919 = vadd.f32 0.0, %v918
      %v920 = vpop.f32.mrb[0].mxu0
      %v921 = vadd.f32 0.0, %v920
      %v922 = vpop.f32.mrb[0].mxu0
      %v923 = vadd.f32 0.0, %v922
      %v924 = vpop.f32.mrb[0].mxu0
      %v925 = vadd.f32 0.0, %v924
      %926 = vmatprep.mubr.bf16.mxu0 0
      %927 = vmatmul.mubr.bf16.gmra.mrb[0].mxu0 %v836
      %v928 = vpop.f32.mrb[0].mxu0
      %v929 = vadd.f32 0.0, %v928
      %v930 = vpop.f32.mrb[0].mxu0
      %v931 = vadd.f32 0.0, %v930
      %v932 = vpop.f32.mrb[0].mxu0
      %v933 = vadd.f32 0.0, %v932
      %v934 = vpop.f32.mrb[0].mxu0
      %v935 = vadd.f32 0.0, %v934
      %936 = vmatprep.mubr.bf16.mxu0 0
      %937 = vmatmul.mubr.bf16.gmra.mrb[0].mxu0 %v839
      %v938 = vpop.f32.mrb[0].mxu0
      %v939 = vadd.f32 0.0, %v938
      %v940 = vpop.f32.mrb[0].mxu0
      %v941 = vadd.f32 0.0, %v940
      %v942 = vpop.f32.mrb[0].mxu0
      %v943 = vadd.f32 0.0, %v942
      %v944 = vpop.f32.mrb[0].mxu0
      %v945 = vadd.f32 0.0, %v944
      %946 = vmatprep.mubr.bf16.mxu0 0
      %947 = vmatmul.mubr.bf16.gmra.mrb[0].mxu0 %v842
      %v948 = vpop.f32.mrb[0].mxu0
      %v949 = vadd.f32 0.0, %v948
      %v950 = vpop.f32.mrb[0].mxu0
      %v951 = vadd.f32 0.0, %v950
      %v952 = vpop.f32.mrb[0].mxu0
      %v953 = vadd.f32 0.0, %v952
      %v954 = vpop.f32.mrb[0].mxu0
      %v955 = vadd.f32 0.0, %v954
      %956 = vdwg.mxu0
      %v957 = vadd.f32 %v689, %v879
      %v958 = vadd.f32 %v691, %v881
      %v959 = vadd.f32 %v693, %v883
      %v960 = vadd.f32 %v695, %v885
      %v961 = vadd.f32 %v699, %v889
      %v962 = vadd.f32 %v701, %v891
      %v963 = vadd.f32 %v703, %v893
      %v964 = vadd.f32 %v705, %v895
      %v965 = vadd.f32 %v709, %v899
      %v966 = vadd.f32 %v711, %v901
      %v967 = vadd.f32 %v713, %v903
      %v968 = vadd.f32 %v715, %v905
      %v969 = vadd.f32 %v719, %v909
      %v970 = vadd.f32 %v721, %v911
      %v971 = vadd.f32 %v723, %v913
      %v972 = vadd.f32 %v725, %v915
      %v973 = vadd.f32 %v729, %v919
      %v974 = vadd.f32 %v731, %v921
      %v975 = vadd.f32 %v733, %v923
      %v976 = vadd.f32 %v735, %v925
      %v977 = vadd.f32 %v739, %v929
      %v978 = vadd.f32 %v741, %v931
      %v979 = vadd.f32 %v743, %v933
      %v980 = vadd.f32 %v745, %v935
      %v981 = vadd.f32 %v749, %v939
      %v982 = vadd.f32 %v751, %v941
      %v983 = vadd.f32 %v753, %v943
      %v984 = vadd.f32 %v755, %v945
      %v985 = vadd.f32 %v759, %v949
      %v986 = vadd.f32 %v761, %v951
      %v987 = vadd.f32 %v763, %v953
      %v988 = vadd.f32 %v765, %v955
      %v989 = vld [vmem:[%s2] sm:$0x3]
      %v991 = vlaneseq
      %v992 = vshrl.u32 %v991, 7
      %v993 = vsub.s32 0, %v992
      %v994 = vrot.slane %v989, %v993
      %v995 = vlaneseq
      %v996 = vshrl.u32 %v995, 7
      %v997 = vsub.s32 1, %v996
      %v998 = vrot.slane %v989, %v997
      %v1001 = vadd.f32 %v957, %v994
      %v1002 = vadd.f32 %v958, %v998
      %v1003 = vadd.f32 %v959, %v994
      %v1004 = vadd.f32 %v960, %v998
      %v1005 = vadd.f32 %v961, %v994
      %v1006 = vadd.f32 %v962, %v998
      %v1007 = vadd.f32 %v963, %v994
      %v1008 = vadd.f32 %v964, %v998
      %v1009 = vadd.f32 %v965, %v994
      %v1010 = vadd.f32 %v966, %v998
      %v1011 = vadd.f32 %v967, %v994
      %v1012 = vadd.f32 %v968, %v998
      %v1013 = vadd.f32 %v969, %v994
      %v1014 = vadd.f32 %v970, %v998
      %v1015 = vadd.f32 %v971, %v994
      %v1016 = vadd.f32 %v972, %v998
      %v1017 = vadd.f32 %v973, %v994
      %v1018 = vadd.f32 %v974, %v998
      %v1019 = vadd.f32 %v975, %v994
      %v1020 = vadd.f32 %v976, %v998
      %v1021 = vadd.f32 %v977, %v994
      %v1022 = vadd.f32 %v978, %v998
      %v1023 = vadd.f32 %v979, %v994
      %v1024 = vadd.f32 %v980, %v998
      %v1025 = vadd.f32 %v981, %v994
      %v1026 = vadd.f32 %v982, %v998
      %v1027 = vadd.f32 %v983, %v994
      %v1028 = vadd.f32 %v984, %v998
      %v1029 = vadd.f32 %v985, %v994
      %v1030 = vadd.f32 %v986, %v998
      %v1031 = vadd.f32 %v987, %v994
      %v1032 = vadd.f32 %v988, %v998
      %v1033 = vmax.f32 %v1001, 0.0
      %v1034 = vmax.f32 %v1002, 0.0
      %v1035 = vmax.f32 %v1003, 0.0
      %v1036 = vmax.f32 %v1004, 0.0
      %v1037 = vmax.f32 %v1005, 0.0
      %v1038 = vmax.f32 %v1006, 0.0
      %v1039 = vmax.f32 %v1007, 0.0
      %v1040 = vmax.f32 %v1008, 0.0
      %v1041 = vmax.f32 %v1009, 0.0
      %v1042 = vmax.f32 %v1010, 0.0
      %v1043 = vmax.f32 %v1011, 0.0
      %v1044 = vmax.f32 %v1012, 0.0
      %v1045 = vmax.f32 %v1013, 0.0
      %v1046 = vmax.f32 %v1014, 0.0
      %v1047 = vmax.f32 %v1015, 0.0
      %v1048 = vmax.f32 %v1016, 0.0
      %v1049 = vmax.f32 %v1017, 0.0
      %v1050 = vmax.f32 %v1018, 0.0
      %v1051 = vmax.f32 %v1019, 0.0
      %v1052 = vmax.f32 %v1020, 0.0
      %v1053 = vmax.f32 %v1021, 0.0
      %v1054 = vmax.f32 %v1022, 0.0
      %v1055 = vmax.f32 %v1023, 0.0
      %v1056 = vmax.f32 %v1024, 0.0
      %v1057 = vmax.f32 %v1025, 0.0
      %v1058 = vmax.f32 %v1026, 0.0
      %v1059 = vmax.f32 %v1027, 0.0
      %v1060 = vmax.f32 %v1028, 0.0
      %v1061 = vmax.f32 %v1029, 0.0
      %v1062 = vmax.f32 %v1030, 0.0
      %v1063 = vmax.f32 %v1031, 0.0
      %v1064 = vmax.f32 %v1032, 0.0
      %vm1097 = vcmask 1046528
      %v1098 = vrot.slane %v1033, 1
      %v1099 = vrot.slane %v1035, 1
      %v1100 = vsel %vm1097, %v1098, %v1099
      %v1101 = vrot.slane %v1034, 1
      %v1102 = vrot.slane %v1036, 1
      %v1103 = vsel %vm1097, %v1101, %v1102
      %v1104 = vrot.slane %v1037, 1
      %v1105 = vsel %vm1097, %v1099, %v1104
      %v1106 = vrot.slane %v1038, 1
      %v1107 = vsel %vm1097, %v1102, %v1106
      %v1108 = vrot.slane %v1039, 1
      %v1109 = vsel %vm1097, %v1104, %v1108
      %v1110 = vrot.slane %v1040, 1
      %v1111 = vsel %vm1097, %v1106, %v1110
      %v1112 = vrot.slane %v1041, 1
      %v1113 = vsel %vm1097, %v1108, %v1112
      %v1114 = vrot.slane %v1042, 1
      %v1115 = vsel %vm1097, %v1110, %v1114
      %v1116 = vrot.slane %v1043, 1
      %v1117 = vsel %vm1097, %v1112, %v1116
      %v1118 = vrot.slane %v1044, 1
      %v1119 = vsel %vm1097, %v1114, %v1118
      %v1120 = vrot.slane %v1045, 1
      %v1121 = vsel %vm1097, %v1116, %v1120
      %v1122 = vrot.slane %v1046, 1
      %v1123 = vsel %vm1097, %v1118, %v1122
      %v1124 = vrot.slane %v1047, 1
      %v1125 = vsel %vm1097, %v1120, %v1124
      %v1126 = vrot.slane %v1048, 1
      %v1127 = vsel %vm1097, %v1122, %v1126
      %v1128 = vrot.slane %v1049, 1
      %v1129 = vsel %vm1097, %v1124, %v1128
      %v1130 = vrot.slane %v1050, 1
      %v1131 = vsel %vm1097, %v1126, %v1130
      %v1132 = vrot.slane %v1051, 1
      %v1133 = vsel %vm1097, %v1128, %v1132
      %v1134 = vrot.slane %v1052, 1
      %v1135 = vsel %vm1097, %v1130, %v1134
      %v1136 = vrot.slane %v1053, 1
      %v1137 = vsel %vm1097, %v1132, %v1136
      %v1138 = vrot.slane %v1054, 1
      %v1139 = vsel %vm1097, %v1134, %v1138
      %v1140 = vrot.slane %v1055, 1
      %v1141 = vsel %vm1097, %v1136, %v1140
      %v1142 = vrot.slane %v1056, 1
      %v1143 = vsel %vm1097, %v1138, %v1142
      %v1144 = vrot.slane %v1057, 1
      %v1145 = vsel %vm1097, %v1140, %v1144
      %v1146 = vrot.slane %v1058, 1
      %v1147 = vsel %vm1097, %v1142, %v1146
      %v1148 = vrot.slane %v1059, 1
      %v1149 = vsel %vm1097, %v1144, %v1148
      %v1150 = vrot.slane %v1060, 1
      %v1151 = vsel %vm1097, %v1146, %v1150
      %v1152 = vrot.slane %v1061, 1
      %v1153 = vsel %vm1097, %v1148, %v1152
      %v1154 = vrot.slane %v1062, 1
      %v1155 = vsel %vm1097, %v1150, %v1154
      %v1156 = vrot.slane %v1063, 1
      %v1157 = vsel %vm1097, %v1152, %v1156
      %v1158 = vrot.slane %v1064, 1
      %v1159 = vsel %vm1097, %v1154, %v1158
      %v1192 = vmax.f32 %v1033, %v1100
      %v1193 = vmax.f32 %v1034, %v1103
      %v1194 = vmax.f32 %v1035, %v1105
      %v1195 = vmax.f32 %v1036, %v1107
      %v1196 = vmax.f32 %v1037, %v1109
      %v1197 = vmax.f32 %v1038, %v1111
      %v1198 = vmax.f32 %v1039, %v1113
      %v1199 = vmax.f32 %v1040, %v1115
      %v1200 = vmax.f32 %v1041, %v1117
      %v1201 = vmax.f32 %v1042, %v1119
      %v1202 = vmax.f32 %v1043, %v1121
      %v1203 = vmax.f32 %v1044, %v1123
      %v1204 = vmax.f32 %v1045, %v1125
      %v1205 = vmax.f32 %v1046, %v1127
      %v1206 = vmax.f32 %v1047, %v1129
      %v1207 = vmax.f32 %v1048, %v1131
      %v1208 = vmax.f32 %v1049, %v1133
      %v1209 = vmax.f32 %v1050, %v1135
      %v1210 = vmax.f32 %v1051, %v1137
      %v1211 = vmax.f32 %v1052, %v1139
      %v1212 = vmax.f32 %v1053, %v1141
      %v1213 = vmax.f32 %v1054, %v1143
      %v1214 = vmax.f32 %v1055, %v1145
      %v1215 = vmax.f32 %v1056, %v1147
      %v1216 = vmax.f32 %v1057, %v1149
      %v1217 = vmax.f32 %v1058, %v1151
      %v1218 = vmax.f32 %v1059, %v1153
      %v1219 = vmax.f32 %v1060, %v1155
      %v1220 = vmax.f32 %v1061, %v1157
      %v1221 = vmax.f32 %v1062, %v1159
      %v1222 = vmax.f32 %v1063, %v1156
      %v1223 = vmax.f32 %v1064, %v1158
      %v1224 = vmax.f32 %v1192, %v1193
      %v1225 = vmax.f32 %v1194, %v1195
      %v1226 = vmax.f32 %v1196, %v1197
      %v1227 = vmax.f32 %v1198, %v1199
      %v1228 = vmax.f32 %v1200, %v1201
      %v1229 = vmax.f32 %v1202, %v1203
      %v1230 = vmax.f32 %v1204, %v1205
      %v1231 = vmax.f32 %v1206, %v1207
      %v1232 = vmax.f32 %v1208, %v1209
      %v1233 = vmax.f32 %v1210, %v1211
      %v1234 = vmax.f32 %v1212, %v1213
      %v1235 = vmax.f32 %v1214, %v1215
      %v1236 = vmax.f32 %v1216, %v1217
      %v1237 = vmax.f32 %v1218, %v1219
      %v1238 = vmax.f32 %v1220, %v1221
      %v1239 = vmax.f32 %v1222, %v1223
      %v1240 = vpack.c.bf16 %v1225, %v1224
      %v1241 = vpack.c.bf16 %v1227, %v1226
      %v1242 = vpack.c.bf16 %v1229, %v1228
      %v1243 = vpack.c.bf16 %v1231, %v1230
      %v1244 = vpack.c.bf16 %v1233, %v1232
      %v1245 = vpack.c.bf16 %v1235, %v1234
      %v1246 = vpack.c.bf16 %v1237, %v1236
      %v1247 = vpack.c.bf16 %v1239, %v1238
      %v1248 = vld [vmem:[%s3] sm:$0xff]
      %v1249 = vld [vmem:[%s3 + $0x8] sm:$0xff]
      %v1250 = vld [vmem:[%s3 + $0x10] sm:$0xff]
      %v1251 = vld [vmem:[%s3 + $0x18] sm:$0xff]
      %v1252 = vld [vmem:[%s3 + $0x20] sm:$0xff]
      %v1253 = vld [vmem:[%s3 + $0x28] sm:$0xff]
      %v1254 = vld [vmem:[%s3 + $0x30] sm:$0xff]
      %v1255 = vld [vmem:[%s3 + $0x38] sm:$0xff]
      %v1256 = vld [vmem:[%s3 + $0x40] sm:$0xff]
      %v1257 = vld [vmem:[%s3 + $0x48] sm:$0xff]
      %v1258 = vld [vmem:[%s3 + $0x50] sm:$0xff]
      %v1259 = vld [vmem:[%s3 + $0x58] sm:$0xff]
      %v1260 = vld [vmem:[%s3 + $0x60] sm:$0xff]
      %v1261 = vld [vmem:[%s3 + $0x68] sm:$0xff]
      %v1262 = vld [vmem:[%s3 + $0x70] sm:$0xff]
      %v1263 = vld [vmem:[%s3 + $0x78] sm:$0xff]
      %s1264 = scalar_lea.vmem %s3, 128
      %v1265 = vld [vmem:[%s1264] sm:$0xff]
      %v1266 = vld [vmem:[%s1264 + $0x8] sm:$0xff]
      %v1267 = vld [vmem:[%s1264 + $0x10] sm:$0xff]
      %v1268 = vld [vmem:[%s1264 + $0x18] sm:$0xff]
      %v1269 = vld [vmem:[%s1264 + $0x20] sm:$0xff]
      %v1270 = vld [vmem:[%s1264 + $0x28] sm:$0xff]
      %v1271 = vld [vmem:[%s1264 + $0x30] sm:$0xff]
      %v1272 = vld [vmem:[%s1264 + $0x38] sm:$0xff]
      %v1273 = vld [vmem:[%s1264 + $0x40] sm:$0xff]
      %v1274 = vld [vmem:[%s1264 + $0x48] sm:$0xff]
      %v1275 = vld [vmem:[%s1264 + $0x50] sm:$0xff]
      %v1276 = vld [vmem:[%s1264 + $0x58] sm:$0xff]
      %v1277 = vld [vmem:[%s1264 + $0x60] sm:$0xff]
      %v1278 = vld [vmem:[%s1264 + $0x68] sm:$0xff]
      %v1279 = vld [vmem:[%s1264 + $0x70] sm:$0xff]
      %v1280 = vld [vmem:[%s1264 + $0x78] sm:$0xff]
      %v1289 = vrot.slane %v1240, 1
      %v1290 = vrot.slane %v1241, 1
      %v1291 = vsel %vm774, %v1289, %v1290
      %v1292 = vrot.slane %v1242, 1
      %v1293 = vsel %vm774, %v1290, %v1292
      %v1294 = vrot.slane %v1243, 1
      %v1295 = vsel %vm774, %v1292, %v1294
      %v1296 = vrot.slane %v1244, 1
      %v1297 = vsel %vm774, %v1294, %v1296
      %v1298 = vrot.slane %v1245, 1
      %v1299 = vsel %vm774, %v1296, %v1298
      %v1300 = vrot.slane %v1246, 1
      %v1301 = vsel %vm774, %v1298, %v1300
      %v1302 = vrot.slane %v1247, 1
      %v1303 = vsel %vm774, %v1300, %v1302
      %v1328 = vunpack.c.l.b16 %v1265
      %v1329 = vunpack.c.h.b16 %v1265
      %v1330 = vunpack.c.l.b16 %v1266
      %v1331 = vunpack.c.h.b16 %v1266
      %v1332 = vunpack.c.l.b16 %v1267
      %v1333 = vunpack.c.h.b16 %v1267
      %v1334 = vunpack.c.l.b16 %v1268
      %v1335 = vunpack.c.h.b16 %v1268
      %v1336 = vunpack.c.l.b16 %v1269
      %v1337 = vunpack.c.h.b16 %v1269
      %v1338 = vunpack.c.l.b16 %v1270
      %v1339 = vunpack.c.h.b16 %v1270
      %v1340 = vunpack.c.l.b16 %v1271
      %v1341 = vunpack.c.h.b16 %v1271
      %v1342 = vunpack.c.l.b16 %v1272
      %v1343 = vunpack.c.h.b16 %v1272
      %v1344 = vunpack.c.l.b16 %v1273
      %v1345 = vunpack.c.h.b16 %v1273
      %v1346 = vunpack.c.l.b16 %v1274
      %v1347 = vunpack.c.h.b16 %v1274
      %v1348 = vunpack.c.l.b16 %v1275
      %v1349 = vunpack.c.h.b16 %v1275
      %v1350 = vunpack.c.l.b16 %v1276
      %v1351 = vunpack.c.h.b16 %v1276
      %v1352 = vunpack.c.l.b16 %v1277
      %v1353 = vunpack.c.h.b16 %v1277
      %v1354 = vunpack.c.l.b16 %v1278
      %v1355 = vunpack.c.h.b16 %v1278
      %v1356 = vunpack.c.l.b16 %v1279
      %v1357 = vunpack.c.h.b16 %v1279
      %v1358 = vunpack.c.l.b16 %v1280
      %v1359 = vunpack.c.h.b16 %v1280
      %v1360 = vpack.c.b16 %v1330, %v1328
      %v1361 = vpack.c.b16 %v1331, %v1329
      %v1362 = vpack.c.b16 %v1334, %v1332
      %v1363 = vpack.c.b16 %v1335, %v1333
      %v1364 = vpack.c.b16 %v1338, %v1336
      %v1365 = vpack.c.b16 %v1339, %v1337
      %v1366 = vpack.c.b16 %v1342, %v1340
      %v1367 = vpack.c.b16 %v1343, %v1341
      %v1368 = vpack.c.b16 %v1346, %v1344
      %v1369 = vpack.c.b16 %v1347, %v1345
      %v1370 = vpack.c.b16 %v1350, %v1348
      %v1371 = vpack.c.b16 %v1351, %v1349
      %v1372 = vpack.c.b16 %v1354, %v1352
      %v1373 = vpack.c.b16 %v1355, %v1353
      %v1374 = vpack.c.b16 %v1358, %v1356
      %v1375 = vpack.c.b16 %v1359, %v1357
      %1392 = vmatprep.subr.bf16.mxu0 %v1361
      %1393 = vmatpush1.bf16.msra.mxu0 %v1360
      %1394 = vmatprep.subr.bf16.mxu0 %v1363
      %1395 = vmatpush1.bf16.msra.mxu0 %v1362
      %1396 = vmatprep.subr.bf16.mxu0 %v1365
      %1397 = vmatpush1.bf16.msra.mxu0 %v1364
      %1398 = vmatprep.subr.bf16.mxu0 %v1367
      %1399 = vmatpush1.bf16.msra.mxu0 %v1366
      %1400 = vmatprep.subr.bf16.mxu0 %v1369
      %1401 = vmatpush1.bf16.msra.mxu0 %v1368
      %1402 = vmatprep.subr.bf16.mxu0 %v1371
      %1403 = vmatpush1.bf16.msra.mxu0 %v1370
      %1404 = vmatprep.subr.bf16.mxu0 %v1373
      %1405 = vmatpush1.bf16.msra.mxu0 %v1372
      %1406 = vmatprep.subr.bf16.mxu0 %v1375
      %1407 = vmatpush1.bf16.msra.mxu0 %v1374
      %1408 = vmatprep.subr.bf16.mxu0 0
      %1409 = vmatpush1.bf16.msra.mxu0 0
      %1410 = vmatprep.subr.bf16.mxu0 0
      %1411 = vmatpush1.bf16.msra.mxu0 0
      %1412 = vmatprep.subr.bf16.mxu0 0
      %1413 = vmatpush1.bf16.msra.mxu0 0
      %1414 = vmatprep.subr.bf16.mxu0 0
      %1415 = vmatpush1.bf16.msra.mxu0 0
      %1416 = vmatprep.subr.bf16.mxu0 0
      %1417 = vmatpush1.bf16.msra.mxu0 0
      %1418 = vmatprep.subr.bf16.mxu0 0
      %1419 = vmatpush1.bf16.msra.mxu0 0
      %1420 = vmatprep.subr.bf16.mxu0 0
      %1421 = vmatpush1.bf16.msra.mxu0 0
      %1422 = vmatprep.subr.bf16.mxu0 0
      %1423 = vmatpush1.bf16.msra.mxu0 0
      %1424 = vmatprep.mubr.bf16.mxu0 0
      %1425 = vmatmul.mubr.bf16.gmra.mrb[0].mxu0 %v1291
      %v1426 = vpop.f32.mrb[0].mxu0
      %v1427 = vadd.f32 0.0, %v1426
      %v1428 = vpop.f32.mrb[0].mxu0
      %v1429 = vadd.f32 0.0, %v1428
      %v1430 = vpop.f32.mrb[0].mxu0
      %v1431 = vadd.f32 0.0, %v1430
      %v1432 = vpop.f32.mrb[0].mxu0
      %v1433 = vadd.f32 0.0, %v1432
      %1434 = vmatprep.mubr.bf16.mxu0 0
      %1435 = vmatmul.mubr.bf16.gmra.mrb[0].mxu0 %v1293
      %v1436 = vpop.f32.mrb[0].mxu0
      %v1437 = vadd.f32 0.0, %v1436
      %v1438 = vpop.f32.mrb[0].mxu0
      %v1439 = vadd.f32 0.0, %v1438
      %v1440 = vpop.f32.mrb[0].mxu0
      %v1441 = vadd.f32 0.0, %v1440
      %v1442 = vpop.f32.mrb[0].mxu0
      %v1443 = vadd.f32 0.0, %v1442
      %1444 = vmatprep.mubr.bf16.mxu0 0
      %1445 = vmatmul.mubr.bf16.gmra.mrb[0].mxu0 %v1295
      %v1446 = vpop.f32.mrb[0].mxu0
      %v1447 = vadd.f32 0.0, %v1446
      %v1448 = vpop.f32.mrb[0].mxu0
      %v1449 = vadd.f32 0.0, %v1448
      %v1450 = vpop.f32.mrb[0].mxu0
      %v1451 = vadd.f32 0.0, %v1450
      %v1452 = vpop.f32.mrb[0].mxu0
      %v1453 = vadd.f32 0.0, %v1452
      %1454 = vmatprep.mubr.bf16.mxu0 0
      %1455 = vmatmul.mubr.bf16.gmra.mrb[0].mxu0 %v1297
      %v1456 = vpop.f32.mrb[0].mxu0
      %v1457 = vadd.f32 0.0, %v1456
      %v1458 = vpop.f32.mrb[0].mxu0
      %v1459 = vadd.f32 0.0, %v1458
      %v1460 = vpop.f32.mrb[0].mxu0
      %v1461 = vadd.f32 0.0, %v1460
      %v1462 = vpop.f32.mrb[0].mxu0
      %v1463 = vadd.f32 0.0, %v1462
      %1464 = vmatprep.mubr.bf16.mxu0 0
      %1465 = vmatmul.mubr.bf16.gmra.mrb[0].mxu0 %v1299
      %v1466 = vpop.f32.mrb[0].mxu0
      %v1467 = vadd.f32 0.0, %v1466
      %v1468 = vpop.f32.mrb[0].mxu0
      %v1469 = vadd.f32 0.0, %v1468
      %v1470 = vpop.f32.mrb[0].mxu0
      %v1471 = vadd.f32 0.0, %v1470
      %v1472 = vpop.f32.mrb[0].mxu0
      %v1473 = vadd.f32 0.0, %v1472
      %1474 = vmatprep.mubr.bf16.mxu0 0
      %1475 = vmatmul.mubr.bf16.gmra.mrb[0].mxu0 %v1301
      %v1476 = vpop.f32.mrb[0].mxu0
      %v1477 = vadd.f32 0.0, %v1476
      %v1478 = vpop.f32.mrb[0].mxu0
      %v1479 = vadd.f32 0.0, %v1478
      %v1480 = vpop.f32.mrb[0].mxu0
      %v1481 = vadd.f32 0.0, %v1480
      %v1482 = vpop.f32.mrb[0].mxu0
      %v1483 = vadd.f32 0.0, %v1482
      %1484 = vmatprep.mubr.bf16.mxu0 0
      %1485 = vmatmul.mubr.bf16.gmra.mrb[0].mxu0 %v1303
      %v1486 = vpop.f32.mrb[0].mxu0
      %v1487 = vadd.f32 0.0, %v1486
      %v1488 = vpop.f32.mrb[0].mxu0
      %v1489 = vadd.f32 0.0, %v1488
      %v1490 = vpop.f32.mrb[0].mxu0
      %v1491 = vadd.f32 0.0, %v1490
      %v1492 = vpop.f32.mrb[0].mxu0
      %v1493 = vadd.f32 0.0, %v1492
      %1494 = vmatprep.mubr.bf16.mxu0 0
      %1495 = vmatmul.mubr.bf16.gmra.mrb[0].mxu0 %v1302
      %v1496 = vpop.f32.mrb[0].mxu0
      %v1497 = vadd.f32 0.0, %v1496
      %v1498 = vpop.f32.mrb[0].mxu0
      %v1499 = vadd.f32 0.0, %v1498
      %v1500 = vpop.f32.mrb[0].mxu0
      %v1501 = vadd.f32 0.0, %v1500
      %v1502 = vpop.f32.mrb[0].mxu0
      %v1503 = vadd.f32 0.0, %v1502
      %1504 = vdwg.mxu0
      %v1521 = vunpack.c.l.b16 %v1248
      %v1522 = vunpack.c.h.b16 %v1248
      %v1523 = vunpack.c.l.b16 %v1249
      %v1524 = vunpack.c.h.b16 %v1249
      %v1525 = vunpack.c.l.b16 %v1250
      %v1526 = vunpack.c.h.b16 %v1250
      %v1527 = vunpack.c.l.b16 %v1251
      %v1528 = vunpack.c.h.b16 %v1251
      %v1529 = vunpack.c.l.b16 %v1252
      %v1530 = vunpack.c.h.b16 %v1252
      %v1531 = vunpack.c.l.b16 %v1253
      %v1532 = vunpack.c.h.b16 %v1253
      %v1533 = vunpack.c.l.b16 %v1254
      %v1534 = vunpack.c.h.b16 %v1254
      %v1535 = vunpack.c.l.b16 %v1255
      %v1536 = vunpack.c.h.b16 %v1255
      %v1537 = vunpack.c.l.b16 %v1256
      %v1538 = vunpack.c.h.b16 %v1256
      %v1539 = vunpack.c.l.b16 %v1257
      %v1540 = vunpack.c.h.b16 %v1257
      %v1541 = vunpack.c.l.b16 %v1258
      %v1542 = vunpack.c.h.b16 %v1258
      %v1543 = vunpack.c.l.b16 %v1259
      %v1544 = vunpack.c.h.b16 %v1259
      %v1545 = vunpack.c.l.b16 %v1260
      %v1546 = vunpack.c.h.b16 %v1260
      %v1547 = vunpack.c.l.b16 %v1261
      %v1548 = vunpack.c.h.b16 %v1261
      %v1549 = vunpack.c.l.b16 %v1262
      %v1550 = vunpack.c.h.b16 %v1262
      %v1551 = vunpack.c.l.b16 %v1263
      %v1552 = vunpack.c.h.b16 %v1263
      %v1553 = vpack.c.b16 %v1523, %v1521
      %v1554 = vpack.c.b16 %v1524, %v1522
      %v1555 = vpack.c.b16 %v1527, %v1525
      %v1556 = vpack.c.b16 %v1528, %v1526
      %v1557 = vpack.c.b16 %v1531, %v1529
      %v1558 = vpack.c.b16 %v1532, %v1530
      %v1559 = vpack.c.b16 %v1535, %v1533
      %v1560 = vpack.c.b16 %v1536, %v1534
      %v1561 = vpack.c.b16 %v1539, %v1537
      %v1562 = vpack.c.b16 %v1540, %v1538
      %v1563 = vpack.c.b16 %v1543, %v1541
      %v1564 = vpack.c.b16 %v1544, %v1542
      %v1565 = vpack.c.b16 %v1547, %v1545
      %v1566 = vpack.c.b16 %v1548, %v1546
      %v1567 = vpack.c.b16 %v1551, %v1549
      %v1568 = vpack.c.b16 %v1552, %v1550
      %1585 = vmatprep.subr.bf16.mxu0 %v1554
      %1586 = vmatpush1.bf16.msra.mxu0 %v1553
      %1587 = vmatprep.subr.bf16.mxu0 %v1556
      %1588 = vmatpush1.bf16.msra.mxu0 %v1555
      %1589 = vmatprep.subr.bf16.mxu0 %v1558
      %1590 = vmatpush1.bf16.msra.mxu0 %v1557
      %1591 = vmatprep.subr.bf16.mxu0 %v1560
      %1592 = vmatpush1.bf16.msra.mxu0 %v1559
      %1593 = vmatprep.subr.bf16.mxu0 %v1562
      %1594 = vmatpush1.bf16.msra.mxu0 %v1561
      %1595 = vmatprep.subr.bf16.mxu0 %v1564
      %1596 = vmatpush1.bf16.msra.mxu0 %v1563
      %1597 = vmatprep.subr.bf16.mxu0 %v1566
      %1598 = vmatpush1.bf16.msra.mxu0 %v1565
      %1599 = vmatprep.subr.bf16.mxu0 %v1568
      %1600 = vmatpush1.bf16.msra.mxu0 %v1567
      %1601 = vmatprep.subr.bf16.mxu0 0
      %1602 = vmatpush1.bf16.msra.mxu0 0
      %1603 = vmatprep.subr.bf16.mxu0 0
      %1604 = vmatpush1.bf16.msra.mxu0 0
      %1605 = vmatprep.subr.bf16.mxu0 0
      %1606 = vmatpush1.bf16.msra.mxu0 0
      %1607 = vmatprep.subr.bf16.mxu0 0
      %1608 = vmatpush1.bf16.msra.mxu0 0
      %1609 = vmatprep.subr.bf16.mxu0 0
      %1610 = vmatpush1.bf16.msra.mxu0 0
      %1611 = vmatprep.subr.bf16.mxu0 0
      %1612 = vmatpush1.bf16.msra.mxu0 0
      %1613 = vmatprep.subr.bf16.mxu0 0
      %1614 = vmatpush1.bf16.msra.mxu0 0
      %1615 = vmatprep.subr.bf16.mxu0 0
      %1616 = vmatpush1.bf16.msra.mxu0 0
      %1617 = vmatprep.mubr.bf16.mxu0 0
      %1618 = vmatmul.mubr.bf16.gmra.mrb[0].mxu0 %v1240
      %v1619 = vpop.f32.mrb[0].mxu0
      %v1620 = vadd.f32 %v1427, %v1619
      %v1621 = vpop.f32.mrb[0].mxu0
      %v1622 = vadd.f32 %v1429, %v1621
      %v1623 = vpop.f32.mrb[0].mxu0
      %v1624 = vadd.f32 %v1431, %v1623
      %v1625 = vpop.f32.mrb[0].mxu0
      %v1626 = vadd.f32 %v1433, %v1625
      %1627 = vmatprep.mubr.bf16.mxu0 0
      %1628 = vmatmul.mubr.bf16.gmra.mrb[0].mxu0 %v1241
      %v1629 = vpop.f32.mrb[0].mxu0
      %v1630 = vadd.f32 %v1437, %v1629
      %v1631 = vpop.f32.mrb[0].mxu0
      %v1632 = vadd.f32 %v1439, %v1631
      %v1633 = vpop.f32.mrb[0].mxu0
      %v1634 = vadd.f32 %v1441, %v1633
      %v1635 = vpop.f32.mrb[0].mxu0
      %v1636 = vadd.f32 %v1443, %v1635
      %1637 = vmatprep.mubr.bf16.mxu0 0
      %1638 = vmatmul.mubr.bf16.gmra.mrb[0].mxu0 %v1242
      %v1639 = vpop.f32.mrb[0].mxu0
      %v1640 = vadd.f32 %v1447, %v1639
      %v1641 = vpop.f32.mrb[0].mxu0
      %v1642 = vadd.f32 %v1449, %v1641
      %v1643 = vpop.f32.mrb[0].mxu0
      %v1644 = vadd.f32 %v1451, %v1643
      %v1645 = vpop.f32.mrb[0].mxu0
      %v1646 = vadd.f32 %v1453, %v1645
      %1647 = vmatprep.mubr.bf16.mxu0 0
      %1648 = vmatmul.mubr.bf16.gmra.mrb[0].mxu0 %v1243
      %v1649 = vpop.f32.mrb[0].mxu0
      %v1650 = vadd.f32 %v1457, %v1649
      %v1651 = vpop.f32.mrb[0].mxu0
      %v1652 = vadd.f32 %v1459, %v1651
      %v1653 = vpop.f32.mrb[0].mxu0
      %v1654 = vadd.f32 %v1461, %v1653
      %v1655 = vpop.f32.mrb[0].mxu0
      %v1656 = vadd.f32 %v1463, %v1655
      %1657 = vmatprep.mubr.bf16.mxu0 0
      %1658 = vmatmul.mubr.bf16.gmra.mrb[0].mxu0 %v1244
      %v1659 = vpop.f32.mrb[0].mxu0
      %v1660 = vadd.f32 %v1467, %v1659
      %v1661 = vpop.f32.mrb[0].mxu0
      %v1662 = vadd.f32 %v1469, %v1661
      %v1663 = vpop.f32.mrb[0].mxu0
      %v1664 = vadd.f32 %v1471, %v1663
      %v1665 = vpop.f32.mrb[0].mxu0
      %v1666 = vadd.f32 %v1473, %v1665
      %1667 = vmatprep.mubr.bf16.mxu0 0
      %1668 = vmatmul.mubr.bf16.gmra.mrb[0].mxu0 %v1245
      %v1669 = vpop.f32.mrb[0].mxu0
      %v1670 = vadd.f32 %v1477, %v1669
      %v1671 = vpop.f32.mrb[0].mxu0
      %v1672 = vadd.f32 %v1479, %v1671
      %v1673 = vpop.f32.mrb[0].mxu0
      %v1674 = vadd.f32 %v1481, %v1673
      %v1675 = vpop.f32.mrb[0].mxu0
      %v1676 = vadd.f32 %v1483, %v1675
      %1677 = vmatprep.mubr.bf16.mxu0 0
      %1678 = vmatmul.mubr.bf16.gmra.mrb[0].mxu0 %v1246
      %v1679 = vpop.f32.mrb[0].mxu0
      %v1680 = vadd.f32 %v1487, %v1679
      %v1681 = vpop.f32.mrb[0].mxu0
      %v1682 = vadd.f32 %v1489, %v1681
      %v1683 = vpop.f32.mrb[0].mxu0
      %v1684 = vadd.f32 %v1491, %v1683
      %v1685 = vpop.f32.mrb[0].mxu0
      %v1686 = vadd.f32 %v1493, %v1685
      %1687 = vmatprep.mubr.bf16.mxu0 0
      %1688 = vmatmul.mubr.bf16.gmra.mrb[0].mxu0 %v1247
      %v1689 = vpop.f32.mrb[0].mxu0
      %v1690 = vadd.f32 %v1497, %v1689
      %v1691 = vpop.f32.mrb[0].mxu0
      %v1692 = vadd.f32 %v1499, %v1691
      %v1693 = vpop.f32.mrb[0].mxu0
      %v1694 = vadd.f32 %v1501, %v1693
      %v1695 = vpop.f32.mrb[0].mxu0
      %v1696 = vadd.f32 %v1503, %v1695
      %1697 = vdwg.mxu0
      %s1698 = scalar_lea.vmem %s3, 256
      %v1699 = vld [vmem:[%s1698] sm:$0xff]
      %v1700 = vld [vmem:[%s1698 + $0x8] sm:$0xff]
      %v1701 = vld [vmem:[%s1698 + $0x10] sm:$0xff]
      %v1702 = vld [vmem:[%s1698 + $0x18] sm:$0xff]
      %v1703 = vld [vmem:[%s1698 + $0x20] sm:$0xff]
      %v1704 = vld [vmem:[%s1698 + $0x28] sm:$0xff]
      %v1705 = vld [vmem:[%s1698 + $0x30] sm:$0xff]
      %v1706 = vld [vmem:[%s1698 + $0x38] sm:$0xff]
      %v1707 = vld [vmem:[%s1698 + $0x40] sm:$0xff]
      %v1708 = vld [vmem:[%s1698 + $0x48] sm:$0xff]
      %v1709 = vld [vmem:[%s1698 + $0x50] sm:$0xff]
      %v1710 = vld [vmem:[%s1698 + $0x58] sm:$0xff]
      %v1711 = vld [vmem:[%s1698 + $0x60] sm:$0xff]
      %v1712 = vld [vmem:[%s1698 + $0x68] sm:$0xff]
      %v1713 = vld [vmem:[%s1698 + $0x70] sm:$0xff]
      %v1714 = vld [vmem:[%s1698 + $0x78] sm:$0xff]
      %vm1715 = vcmask 1045504
      %v1716 = vrot.slane %v1240, 2
      %v1717 = vrot.slane %v1241, 2
      %v1718 = vsel %vm1715, %v1716, %v1717
      %v1719 = vrot.slane %v1242, 2
      %v1720 = vsel %vm1715, %v1717, %v1719
      %v1721 = vrot.slane %v1243, 2
      %v1722 = vsel %vm1715, %v1719, %v1721
      %v1723 = vrot.slane %v1244, 2
      %v1724 = vsel %vm1715, %v1721, %v1723
      %v1725 = vrot.slane %v1245, 2
      %v1726 = vsel %vm1715, %v1723, %v1725
      %v1727 = vrot.slane %v1246, 2
      %v1728 = vsel %vm1715, %v1725, %v1727
      %v1729 = vrot.slane %v1247, 2
      %v1730 = vsel %vm1715, %v1727, %v1729
      %v1755 = vunpack.c.l.b16 %v1699
      %v1756 = vunpack.c.h.b16 %v1699
      %v1757 = vunpack.c.l.b16 %v1700
      %v1758 = vunpack.c.h.b16 %v1700
      %v1759 = vunpack.c.l.b16 %v1701
      %v1760 = vunpack.c.h.b16 %v1701
      %v1761 = vunpack.c.l.b16 %v1702
      %v1762 = vunpack.c.h.b16 %v1702
      %v1763 = vunpack.c.l.b16 %v1703
      %v1764 = vunpack.c.h.b16 %v1703
      %v1765 = vunpack.c.l.b16 %v1704
      %v1766 = vunpack.c.h.b16 %v1704
      %v1767 = vunpack.c.l.b16 %v1705
      %v1768 = vunpack.c.h.b16 %v1705
      %v1769 = vunpack.c.l.b16 %v1706
      %v1770 = vunpack.c.h.b16 %v1706
      %v1771 = vunpack.c.l.b16 %v1707
      %v1772 = vunpack.c.h.b16 %v1707
      %v1773 = vunpack.c.l.b16 %v1708
      %v1774 = vunpack.c.h.b16 %v1708
      %v1775 = vunpack.c.l.b16 %v1709
      %v1776 = vunpack.c.h.b16 %v1709
      %v1777 = vunpack.c.l.b16 %v1710
      %v1778 = vunpack.c.h.b16 %v1710
      %v1779 = vunpack.c.l.b16 %v1711
      %v1780 = vunpack.c.h.b16 %v1711
      %v1781 = vunpack.c.l.b16 %v1712
      %v1782 = vunpack.c.h.b16 %v1712
      %v1783 = vunpack.c.l.b16 %v1713
      %v1784 = vunpack.c.h.b16 %v1713
      %v1785 = vunpack.c.l.b16 %v1714
      %v1786 = vunpack.c.h.b16 %v1714
      %v1787 = vpack.c.b16 %v1757, %v1755
      %v1788 = vpack.c.b16 %v1758, %v1756
      %v1789 = vpack.c.b16 %v1761, %v1759
      %v1790 = vpack.c.b16 %v1762, %v1760
      %v1791 = vpack.c.b16 %v1765, %v1763
      %v1792 = vpack.c.b16 %v1766, %v1764
      %v1793 = vpack.c.b16 %v1769, %v1767
      %v1794 = vpack.c.b16 %v1770, %v1768
      %v1795 = vpack.c.b16 %v1773, %v1771
      %v1796 = vpack.c.b16 %v1774, %v1772
      %v1797 = vpack.c.b16 %v1777, %v1775
      %v1798 = vpack.c.b16 %v1778, %v1776
      %v1799 = vpack.c.b16 %v1781, %v1779
      %v1800 = vpack.c.b16 %v1782, %v1780
      %v1801 = vpack.c.b16 %v1785, %v1783
      %v1802 = vpack.c.b16 %v1786, %v1784
      %1819 = vmatprep.subr.bf16.mxu0 %v1788
      %1820 = vmatpush1.bf16.msra.mxu0 %v1787
      %1821 = vmatprep.subr.bf16.mxu0 %v1790
      %1822 = vmatpush1.bf16.msra.mxu0 %v1789
      %1823 = vmatprep.subr.bf16.mxu0 %v1792
      %1824 = vmatpush1.bf16.msra.mxu0 %v1791
      %1825 = vmatprep.subr.bf16.mxu0 %v1794
      %1826 = vmatpush1.bf16.msra.mxu0 %v1793
      %1827 = vmatprep.subr.bf16.mxu0 %v1796
      %1828 = vmatpush1.bf16.msra.mxu0 %v1795
      %1829 = vmatprep.subr.bf16.mxu0 %v1798
      %1830 = vmatpush1.bf16.msra.mxu0 %v1797
      %1831 = vmatprep.subr.bf16.mxu0 %v1800
      %1832 = vmatpush1.bf16.msra.mxu0 %v1799
      %1833 = vmatprep.subr.bf16.mxu0 %v1802
      %1834 = vmatpush1.bf16.msra.mxu0 %v1801
      %1835 = vmatprep.subr.bf16.mxu0 0
      %1836 = vmatpush1.bf16.msra.mxu0 0
      %1837 = vmatprep.subr.bf16.mxu0 0
      %1838 = vmatpush1.bf16.msra.mxu0 0
      %1839 = vmatprep.subr.bf16.mxu0 0
      %1840 = vmatpush1.bf16.msra.mxu0 0
      %1841 = vmatprep.subr.bf16.mxu0 0
      %1842 = vmatpush1.bf16.msra.mxu0 0
      %1843 = vmatprep.subr.bf16.mxu0 0
      %1844 = vmatpush1.bf16.msra.mxu0 0
      %1845 = vmatprep.subr.bf16.mxu0 0
      %1846 = vmatpush1.bf16.msra.mxu0 0
      %1847 = vmatprep.subr.bf16.mxu0 0
      %1848 = vmatpush1.bf16.msra.mxu0 0
      %1849 = vmatprep.subr.bf16.mxu0 0
      %1850 = vmatpush1.bf16.msra.mxu0 0
      %1851 = vmatprep.mubr.bf16.mxu0 0
      %1852 = vmatmul.mubr.bf16.gmra.mrb[0].mxu0 %v1718
      %v1853 = vpop.f32.mrb[0].mxu0
      %v1854 = vadd.f32 0.0, %v1853
      %v1855 = vpop.f32.mrb[0].mxu0
      %v1856 = vadd.f32 0.0, %v1855
      %v1857 = vpop.f32.mrb[0].mxu0
      %v1858 = vadd.f32 0.0, %v1857
      %v1859 = vpop.f32.mrb[0].mxu0
      %v1860 = vadd.f32 0.0, %v1859
      %1861 = vmatprep.mubr.bf16.mxu0 0
      %1862 = vmatmul.mubr.bf16.gmra.mrb[0].mxu0 %v1720
      %v1863 = vpop.f32.mrb[0].mxu0
      %v1864 = vadd.f32 0.0, %v1863
      %v1865 = vpop.f32.mrb[0].mxu0
      %v1866 = vadd.f32 0.0, %v1865
      %v1867 = vpop.f32.mrb[0].mxu0
      %v1868 = vadd.f32 0.0, %v1867
      %v1869 = vpop.f32.mrb[0].mxu0
      %v1870 = vadd.f32 0.0, %v1869
      %1871 = vmatprep.mubr.bf16.mxu0 0
      %1872 = vmatmul.mubr.bf16.gmra.mrb[0].mxu0 %v1722
      %v1873 = vpop.f32.mrb[0].mxu0
      %v1874 = vadd.f32 0.0, %v1873
      %v1875 = vpop.f32.mrb[0].mxu0
      %v1876 = vadd.f32 0.0, %v1875
      %v1877 = vpop.f32.mrb[0].mxu0
      %v1878 = vadd.f32 0.0, %v1877
      %v1879 = vpop.f32.mrb[0].mxu0
      %v1880 = vadd.f32 0.0, %v1879
      %1881 = vmatprep.mubr.bf16.mxu0 0
      %1882 = vmatmul.mubr.bf16.gmra.mrb[0].mxu0 %v1724
      %v1883 = vpop.f32.mrb[0].mxu0
      %v1884 = vadd.f32 0.0, %v1883
      %v1885 = vpop.f32.mrb[0].mxu0
      %v1886 = vadd.f32 0.0, %v1885
      %v1887 = vpop.f32.mrb[0].mxu0
      %v1888 = vadd.f32 0.0, %v1887
      %v1889 = vpop.f32.mrb[0].mxu0
      %v1890 = vadd.f32 0.0, %v1889
      %1891 = vmatprep.mubr.bf16.mxu0 0
      %1892 = vmatmul.mubr.bf16.gmra.mrb[0].mxu0 %v1726
      %v1893 = vpop.f32.mrb[0].mxu0
      %v1894 = vadd.f32 0.0, %v1893
      %v1895 = vpop.f32.mrb[0].mxu0
      %v1896 = vadd.f32 0.0, %v1895
      %v1897 = vpop.f32.mrb[0].mxu0
      %v1898 = vadd.f32 0.0, %v1897
      %v1899 = vpop.f32.mrb[0].mxu0
      %v1900 = vadd.f32 0.0, %v1899
      %1901 = vmatprep.mubr.bf16.mxu0 0
      %1902 = vmatmul.mubr.bf16.gmra.mrb[0].mxu0 %v1728
      %v1903 = vpop.f32.mrb[0].mxu0
      %v1904 = vadd.f32 0.0, %v1903
      %v1905 = vpop.f32.mrb[0].mxu0
      %v1906 = vadd.f32 0.0, %v1905
      %v1907 = vpop.f32.mrb[0].mxu0
      %v1908 = vadd.f32 0.0, %v1907
      %v1909 = vpop.f32.mrb[0].mxu0
      %v1910 = vadd.f32 0.0, %v1909
      %1911 = vmatprep.mubr.bf16.mxu0 0
      %1912 = vmatmul.mubr.bf16.gmra.mrb[0].mxu0 %v1730
      %v1913 = vpop.f32.mrb[0].mxu0
      %v1914 = vadd.f32 0.0, %v1913
      %v1915 = vpop.f32.mrb[0].mxu0
      %v1916 = vadd.f32 0.0, %v1915
      %v1917 = vpop.f32.mrb[0].mxu0
      %v1918 = vadd.f32 0.0, %v1917
      %v1919 = vpop.f32.mrb[0].mxu0
      %v1920 = vadd.f32 0.0, %v1919
      %1921 = vmatprep.mubr.bf16.mxu0 0
      %1922 = vmatmul.mubr.bf16.gmra.mrb[0].mxu0 %v1729
      %v1923 = vpop.f32.mrb[0].mxu0
      %v1924 = vadd.f32 0.0, %v1923
      %v1925 = vpop.f32.mrb[0].mxu0
      %v1926 = vadd.f32 0.0, %v1925
      %v1927 = vpop.f32.mrb[0].mxu0
      %v1928 = vadd.f32 0.0, %v1927
      %v1929 = vpop.f32.mrb[0].mxu0
      %v1930 = vadd.f32 0.0, %v1929
      %1931 = vdwg.mxu0
      %v1932 = vadd.f32 %v1620, %v1854
      %v1933 = vadd.f32 %v1622, %v1856
      %v1934 = vadd.f32 %v1624, %v1858
      %v1935 = vadd.f32 %v1626, %v1860
      %v1936 = vadd.f32 %v1630, %v1864
      %v1937 = vadd.f32 %v1632, %v1866
      %v1938 = vadd.f32 %v1634, %v1868
      %v1939 = vadd.f32 %v1636, %v1870
      %v1940 = vadd.f32 %v1640, %v1874
      %v1941 = vadd.f32 %v1642, %v1876
      %v1942 = vadd.f32 %v1644, %v1878
      %v1943 = vadd.f32 %v1646, %v1880
      %v1944 = vadd.f32 %v1650, %v1884
      %v1945 = vadd.f32 %v1652, %v1886
      %v1946 = vadd.f32 %v1654, %v1888
      %v1947 = vadd.f32 %v1656, %v1890
      %v1948 = vadd.f32 %v1660, %v1894
      %v1949 = vadd.f32 %v1662, %v1896
      %v1950 = vadd.f32 %v1664, %v1898
      %v1951 = vadd.f32 %v1666, %v1900
      %v1952 = vadd.f32 %v1670, %v1904
      %v1953 = vadd.f32 %v1672, %v1906
      %v1954 = vadd.f32 %v1674, %v1908
      %v1955 = vadd.f32 %v1676, %v1910
      %v1956 = vadd.f32 %v1680, %v1914
      %v1957 = vadd.f32 %v1682, %v1916
      %v1958 = vadd.f32 %v1684, %v1918
      %v1959 = vadd.f32 %v1686, %v1920
      %v1960 = vadd.f32 %v1690, %v1924
      %v1961 = vadd.f32 %v1692, %v1926
      %v1962 = vadd.f32 %v1694, %v1928
      %v1963 = vadd.f32 %v1696, %v1930
      %v1964 = vld [vmem:[%s4] sm:$0x3]
      %v1966 = vlaneseq
      %v1967 = vshrl.u32 %v1966, 7
      %v1968 = vsub.s32 0, %v1967
      %v1969 = vrot.slane %v1964, %v1968
      %v1970 = vlaneseq
      %v1971 = vshrl.u32 %v1970, 7
      %v1972 = vsub.s32 1, %v1971
      %v1973 = vrot.slane %v1964, %v1972
      %v1976 = vadd.f32 %v1932, %v1969
      %v1977 = vadd.f32 %v1933, %v1973
      %v1978 = vadd.f32 %v1934, %v1969
      %v1979 = vadd.f32 %v1935, %v1973
      %v1980 = vadd.f32 %v1936, %v1969
      %v1981 = vadd.f32 %v1937, %v1973
      %v1982 = vadd.f32 %v1938, %v1969
      %v1983 = vadd.f32 %v1939, %v1973
      %v1984 = vadd.f32 %v1940, %v1969
      %v1985 = vadd.f32 %v1941, %v1973
      %v1986 = vadd.f32 %v1942, %v1969
      %v1987 = vadd.f32 %v1943, %v1973
      %v1988 = vadd.f32 %v1944, %v1969
      %v1989 = vadd.f32 %v1945, %v1973
      %v1990 = vadd.f32 %v1946, %v1969
      %v1991 = vadd.f32 %v1947, %v1973
      %v1992 = vadd.f32 %v1948, %v1969
      %v1993 = vadd.f32 %v1949, %v1973
      %v1994 = vadd.f32 %v1950, %v1969
      %v1995 = vadd.f32 %v1951, %v1973
      %v1996 = vadd.f32 %v1952, %v1969
      %v1997 = vadd.f32 %v1953, %v1973
      %v1998 = vadd.f32 %v1954, %v1969
      %v1999 = vadd.f32 %v1955, %v1973
      %v2000 = vadd.f32 %v1956, %v1969
      %v2001 = vadd.f32 %v1957, %v1973
      %v2002 = vadd.f32 %v1958, %v1969
      %v2003 = vadd.f32 %v1959, %v1973
      %v2004 = vadd.f32 %v1960, %v1969
      %v2005 = vadd.f32 %v1961, %v1973
      %v2006 = vadd.f32 %v1962, %v1969
      %v2007 = vadd.f32 %v1963, %v1973
      %v2008 = vmax.f32 %v1976, 0.0
      %v2009 = vmax.f32 %v1977, 0.0
      %v2010 = vmax.f32 %v1978, 0.0
      %v2011 = vmax.f32 %v1979, 0.0
      %v2012 = vmax.f32 %v1980, 0.0
      %v2013 = vmax.f32 %v1981, 0.0
      %v2014 = vmax.f32 %v1982, 0.0
      %v2015 = vmax.f32 %v1983, 0.0
      %v2016 = vmax.f32 %v1984, 0.0
      %v2017 = vmax.f32 %v1985, 0.0
      %v2018 = vmax.f32 %v1986, 0.0
      %v2019 = vmax.f32 %v1987, 0.0
      %v2020 = vmax.f32 %v1988, 0.0
      %v2021 = vmax.f32 %v1989, 0.0
      %v2022 = vmax.f32 %v1990, 0.0
      %v2023 = vmax.f32 %v1991, 0.0
      %v2024 = vmax.f32 %v1992, 0.0
      %v2025 = vmax.f32 %v1993, 0.0
      %v2026 = vmax.f32 %v1994, 0.0
      %v2027 = vmax.f32 %v1995, 0.0
      %v2028 = vmax.f32 %v1996, 0.0
      %v2029 = vmax.f32 %v1997, 0.0
      %v2030 = vmax.f32 %v1998, 0.0
      %v2031 = vmax.f32 %v1999, 0.0
      %v2032 = vmax.f32 %v2000, 0.0
      %v2033 = vmax.f32 %v2001, 0.0
      %v2034 = vmax.f32 %v2002, 0.0
      %v2035 = vmax.f32 %v2003, 0.0
      %v2036 = vmax.f32 %v2004, 0.0
      %v2037 = vmax.f32 %v2005, 0.0
      %v2038 = vmax.f32 %v2006, 0.0
      %v2039 = vmax.f32 %v2007, 0.0
      %v2040 = vpack.c.bf16 %v2010, %v2008
      %v2041 = vpack.c.bf16 %v2011, %v2009
      %v2042 = vpack.c.bf16 %v2014, %v2012
      %v2043 = vpack.c.bf16 %v2015, %v2013
      %v2044 = vpack.c.bf16 %v2018, %v2016
      %v2045 = vpack.c.bf16 %v2019, %v2017
      %v2046 = vpack.c.bf16 %v2022, %v2020
      %v2047 = vpack.c.bf16 %v2023, %v2021
      %v2048 = vpack.c.bf16 %v2026, %v2024
      %v2049 = vpack.c.bf16 %v2027, %v2025
      %v2050 = vpack.c.bf16 %v2030, %v2028
      %v2051 = vpack.c.bf16 %v2031, %v2029
      %v2052 = vpack.c.bf16 %v2034, %v2032
      %v2053 = vpack.c.bf16 %v2035, %v2033
      %v2054 = vpack.c.bf16 %v2038, %v2036
      %v2055 = vpack.c.bf16 %v2039, %v2037
      %v2056 = vld [vmem:[%s5] sm:$0xf]
      %v2057 = vld [vmem:[%s5 + $0x4] sm:$0xf]
      %v2058 = vld [vmem:[%s5 + $0x8] sm:$0xf]
      %v2059 = vld [vmem:[%s5 + $0xc] sm:$0xf]
      %v2060 = vld [vmem:[%s5 + $0x10] sm:$0xf]
      %v2061 = vld [vmem:[%s5 + $0x14] sm:$0xf]
      %v2062 = vld [vmem:[%s5 + $0x18] sm:$0xf]
      %v2063 = vld [vmem:[%s5 + $0x1c] sm:$0xf]
      %v2064 = vld [vmem:[%s5 + $0x20] sm:$0xf]
      %v2065 = vld [vmem:[%s5 + $0x24] sm:$0xf]
      %v2066 = vld [vmem:[%s5 + $0x28] sm:$0xf]
      %v2067 = vld [vmem:[%s5 + $0x2c] sm:$0xf]
      %v2068 = vld [vmem:[%s5 + $0x30] sm:$0xf]
      %v2069 = vld [vmem:[%s5 + $0x34] sm:$0xf]
      %v2070 = vld [vmem:[%s5 + $0x38] sm:$0xf]
      %v2071 = vld [vmem:[%s5 + $0x3c] sm:$0xf]
      %v2072 = vld [vmem:[%s5 + $0x40] sm:$0xf]
      %v2073 = vld [vmem:[%s5 + $0x44] sm:$0xf]
      %v2074 = vld [vmem:[%s5 + $0x48] sm:$0xf]
      %v2075 = vld [vmem:[%s5 + $0x4c] sm:$0xf]
      %v2096 = vunpack.c.l.b16 %v2056
      %v2097 = vunpack.c.l.b16 %v2057
      %v2098 = vunpack.c.l.b16 %v2058
      %v2099 = vunpack.c.l.b16 %v2059
      %v2100 = vunpack.c.l.b16 %v2060
      %v2101 = vunpack.c.l.b16 %v2061
      %v2102 = vunpack.c.l.b16 %v2062
      %v2103 = vunpack.c.l.b16 %v2063
      %v2104 = vunpack.c.l.b16 %v2064
      %v2105 = vunpack.c.l.b16 %v2065
      %v2106 = vunpack.c.l.b16 %v2066
      %v2107 = vunpack.c.l.b16 %v2067
      %v2108 = vunpack.c.l.b16 %v2068
      %v2109 = vunpack.c.l.b16 %v2069
      %v2110 = vunpack.c.l.b16 %v2070
      %v2111 = vunpack.c.l.b16 %v2071
      %v2112 = vunpack.c.l.b16 %v2072
      %v2113 = vunpack.c.l.b16 %v2073
      %v2114 = vunpack.c.l.b16 %v2074
      %v2115 = vunpack.c.l.b16 %v2075
      %v2116 = vpack.c.b16 %v2097, %v2096
      %v2117 = vpack.c.b16 %v2099, %v2098
      %v2118 = vpack.c.b16 %v2101, %v2100
      %v2119 = vpack.c.b16 %v2103, %v2102
      %v2120 = vpack.c.b16 %v2105, %v2104
      %v2121 = vpack.c.b16 %v2107, %v2106
      %v2122 = vpack.c.b16 %v2109, %v2108
      %v2123 = vpack.c.b16 %v2111, %v2110
      %v2124 = vpack.c.b16 %v2113, %v2112
      %v2125 = vpack.c.b16 %v2115, %v2114
      %vm2136 = vcmask 261120
      %v2138 = vsel %vm2136, %v2041, 0
      %v2141 = vsel %vm2136, %v2043, 0
      %v2144 = vsel %vm2136, %v2045, 0
      %v2147 = vsel %vm2136, %v2047, 0
      %v2150 = vsel %vm2136, %v2049, 0
      %v2153 = vsel %vm2136, %v2051, 0
      %v2156 = vsel %vm2136, %v2053, 0
      %v2159 = vsel %vm2136, %v2055, 0
      %2161 = vmatprep.subr.bf16.mxu0 0
      %2162 = vmatpush1.bf16.msra.mxu0 %v2116
      %2163 = vmatprep.subr.bf16.mxu0 0
      %2164 = vmatpush1.bf16.msra.mxu0 %v2117
      %2165 = vmatprep.subr.bf16.mxu0 0
      %2166 = vmatpush1.bf16.msra.mxu0 %v2118
      %2167 = vmatprep.subr.bf16.mxu0 0
      %2168 = vmatpush1.bf16.msra.mxu0 %v2119
      %2169 = vmatprep.subr.bf16.mxu0 0
      %2170 = vmatpush1.bf16.msra.mxu0 %v2120
      %2171 = vmatprep.subr.bf16.mxu0 0
      %2172 = vmatpush1.bf16.msra.mxu0 %v2121
      %2173 = vmatprep.subr.bf16.mxu0 0
      %2174 = vmatpush1.bf16.msra.mxu0 %v2122
      %2175 = vmatprep.subr.bf16.mxu0 0
      %2176 = vmatpush1.bf16.msra.mxu0 %v2123
      %2177 = vmatprep.subr.bf16.mxu0 0
      %2178 = vmatpush1.bf16.msra.mxu0 %v2124
      %2179 = vmatprep.subr.bf16.mxu0 0
      %2180 = vmatpush1.bf16.msra.mxu0 %v2125
      %2181 = vmatprep.subr.bf16.mxu0 0
      %2182 = vmatpush1.bf16.msra.mxu0 0
      %2183 = vmatprep.subr.bf16.mxu0 0
      %2184 = vmatpush1.bf16.msra.mxu0 0
      %2185 = vmatprep.subr.bf16.mxu0 0
      %2186 = vmatpush1.bf16.msra.mxu0 0
      %2187 = vmatprep.subr.bf16.mxu0 0
      %2188 = vmatpush1.bf16.msra.mxu0 0
      %2189 = vmatprep.subr.bf16.mxu0 0
      %2190 = vmatpush1.bf16.msra.mxu0 0
      %2191 = vmatprep.subr.bf16.mxu0 0
      %2192 = vmatpush1.bf16.msra.mxu0 0
      %2193 = vmatprep.mubr.bf16.mxu0 %v2138
      %2194 = vmatmul.mubr.bf16.gmra.mrb[0].mxu0 %v2040
      %v2195 = vpop.f32.mrb[0].mxu0
      %v2196 = vadd.f32 0.0, %v2195
      %v2197 = vpop.f32.mrb[0].mxu0
      %v2198 = vpop.f32.mrb[0].mxu0
      %v2199 = vadd.f32 0.0, %v2198
      %v2200 = vpop.f32.mrb[0].mxu0
      %2201 = vmatprep.mubr.bf16.mxu0 %v2141
      %2202 = vmatmul.mubr.bf16.gmra.mrb[0].mxu0 %v2042
      %v2203 = vpop.f32.mrb[0].mxu0
      %v2204 = vadd.f32 0.0, %v2203
      %v2205 = vpop.f32.mrb[0].mxu0
      %v2206 = vpop.f32.mrb[0].mxu0
      %v2207 = vadd.f32 0.0, %v2206
      %v2208 = vpop.f32.mrb[0].mxu0
      %2209 = vmatprep.mubr.bf16.mxu0 %v2144
      %2210 = vmatmul.mubr.bf16.gmra.mrb[0].mxu0 %v2044
      %v2211 = vpop.f32.mrb[0].mxu0
      %v2212 = vadd.f32 0.0, %v2211
      %v2213 = vpop.f32.mrb[0].mxu0
      %v2214 = vpop.f32.mrb[0].mxu0
      %v2215 = vadd.f32 0.0, %v2214
      %v2216 = vpop.f32.mrb[0].mxu0
      %2217 = vmatprep.mubr.bf16.mxu0 %v2147
      %2218 = vmatmul.mubr.bf16.gmra.mrb[0].mxu0 %v2046
      %v2219 = vpop.f32.mrb[0].mxu0
      %v2220 = vadd.f32 0.0, %v2219
      %v2221 = vpop.f32.mrb[0].mxu0
      %v2222 = vpop.f32.mrb[0].mxu0
      %v2223 = vadd.f32 0.0, %v2222
      %v2224 = vpop.f32.mrb[0].mxu0
      %2225 = vmatprep.mubr.bf16.mxu0 %v2150
      %2226 = vmatmul.mubr.bf16.gmra.mrb[0].mxu0 %v2048
      %v2227 = vpop.f32.mrb[0].mxu0
      %v2228 = vadd.f32 0.0, %v2227
      %v2229 = vpop.f32.mrb[0].mxu0
      %v2230 = vpop.f32.mrb[0].mxu0
      %v2231 = vadd.f32 0.0, %v2230
      %v2232 = vpop.f32.mrb[0].mxu0
      %2233 = vmatprep.mubr.bf16.mxu0 %v2153
      %2234 = vmatmul.mubr.bf16.gmra.mrb[0].mxu0 %v2050
      %v2235 = vpop.f32.mrb[0].mxu0
      %v2236 = vadd.f32 0.0, %v2235
      %v2237 = vpop.f32.mrb[0].mxu0
      %v2238 = vpop.f32.mrb[0].mxu0
      %v2239 = vadd.f32 0.0, %v2238
      %v2240 = vpop.f32.mrb[0].mxu0
      %2241 = vmatprep.mubr.bf16.mxu0 %v2156
      %2242 = vmatmul.mubr.bf16.gmra.mrb[0].mxu0 %v2052
      %v2243 = vpop.f32.mrb[0].mxu0
      %v2244 = vadd.f32 0.0, %v2243
      %v2245 = vpop.f32.mrb[0].mxu0
      %v2246 = vpop.f32.mrb[0].mxu0
      %v2247 = vadd.f32 0.0, %v2246
      %v2248 = vpop.f32.mrb[0].mxu0
      %2249 = vmatprep.mubr.bf16.mxu0 %v2159
      %2250 = vmatmul.mubr.bf16.gmra.mrb[0].mxu0 %v2054
      %v2251 = vpop.f32.mrb[0].mxu0
      %v2252 = vadd.f32 0.0, %v2251
      %v2253 = vpop.f32.mrb[0].mxu0
      %v2254 = vpop.f32.mrb[0].mxu0
      %v2255 = vadd.f32 0.0, %v2254
      %v2256 = vpop.f32.mrb[0].mxu0
      %2257 = vdwg.mxu0
      %v2258 = vld [vmem:[%s6] sm:$0xff]
      %v2259 = vld [vmem:[%s7] sm:$0x1]
      %v2261 = vlaneseq
      %v2262 = vshrl.u32 %v2261, 7
      %v2263 = vsub.s32 0, %v2262
      %v2264 = vrot.slane %v2259, %v2263
      %vm2266 = vcmask 990208
      %v2268 = vsel %vm2266, %v2258, 0
      %vm2270 = vcmask 1040384
      %v2272 = vsel %vm2270, %v2255, 0
      %2274 = vmatprep.subr.mxu0 0.0
      %2275 = vmatpush1.msra.mxu0 %v2196
      %2276 = vmatprep.subr.mxu0 0.0
      %2277 = vmatpush1.msra.mxu0 %v2199
      %2278 = vmatprep.subr.mxu0 0.0
      %2279 = vmatpush1.msra.mxu0 %v2204
      %2280 = vmatprep.subr.mxu0 0.0
      %2281 = vmatpush1.msra.mxu0 %v2207
      %2282 = vmatprep.subr.mxu0 0.0
      %2283 = vmatpush1.msra.mxu0 %v2212
      %2284 = vmatprep.subr.mxu0 0.0
      %2285 = vmatpush1.msra.mxu0 %v2215
      %2286 = vmatprep.subr.mxu0 0.0
      %2287 = vmatpush1.msra.mxu0 %v2220
      %2288 = vmatprep.subr.mxu0 0.0
      %2289 = vmatpush1.msra.mxu0 %v2223
      %2290 = vmatprep.subr.mxu0 0.0
      %2291 = vmatpush1.msra.mxu0 %v2228
      %2292 = vmatprep.subr.mxu0 0.0
      %2293 = vmatpush1.msra.mxu0 %v2231
      %2294 = vmatprep.subr.mxu0 0.0
      %2295 = vmatpush1.msra.mxu0 %v2236
      %2296 = vmatprep.subr.mxu0 0.0
      %2297 = vmatpush1.msra.mxu0 %v2239
      %2298 = vmatprep.subr.mxu0 0.0
      %2299 = vmatpush1.msra.mxu0 %v2244
      %2300 = vmatprep.subr.mxu0 0.0
      %2301 = vmatpush1.msra.mxu0 %v2247
      %2302 = vmatprep.subr.mxu0 0.0
      %2303 = vmatpush1.msra.mxu0 %v2252
      %2304 = vmatprep.subr.mxu0 0.0
      %2305 = vmatpush1.msra.mxu0 %v2272
      %2306 = vmatprep.subr.mxu0 0.0
      %2307 = vmatpush1.msra.mxu0 0.0
      %2308 = vmatprep.subr.mxu0 0.0
      %2309 = vmatpush1.msra.mxu0 0.0
      %2310 = vmatprep.subr.mxu0 0.0
      %2311 = vmatpush1.msra.mxu0 0.0
      %2312 = vmatprep.subr.mxu0 0.0
      %2313 = vmatpush1.msra.mxu0 0.0
      %2314 = vmatprep.subr.mxu0 0.0
      %2315 = vmatpush1.msra.mxu0 0.0
      %2316 = vmatprep.subr.mxu0 0.0
      %2317 = vmatpush1.msra.mxu0 0.0
      %2318 = vmatprep.subr.mxu0 0.0
      %2319 = vmatpush1.msra.mxu0 0.0
      %2320 = vmatprep.subr.mxu0 0.0
      %2321 = vmatpush1.msra.mxu0 0.0
      %2322 = vmatprep.subr.mxu0 0.0
      %2323 = vmatpush1.msra.mxu0 0.0
      %2324 = vmatprep.subr.mxu0 0.0
      %2325 = vmatpush1.msra.mxu0 0.0
      %2326 = vmatprep.subr.mxu0 0.0
      %2327 = vmatpush1.msra.mxu0 0.0
      %2328 = vmatprep.subr.mxu0 0.0
      %2329 = vmatpush1.msra.mxu0 0.0
      %2330 = vmatprep.subr.mxu0 0.0
      %2331 = vmatpush1.msra.mxu0 0.0
      %2332 = vmatprep.subr.mxu0 0.0
      %2333 = vmatpush1.msra.mxu0 0.0
      %2334 = vmatprep.subr.mxu0 0.0
      %2335 = vmatpush1.msra.mxu0 0.0
      %2336 = vmatprep.subr.mxu0 0.0
      %2337 = vmatpush1.msra.mxu0 0.0
      %2338 = vmatprep.mubr.f32.mxu0 0.0
      %2339 = vmatmul.mubr.f32.gmra.mrb[0].mxu0 %v2268
      %v2340 = vpop.f32.mrb[0].mxu0
      %v2341 = vadd.f32 %v2264, %v2340
      %v2342 = vpop.f32.mrb[0].mxu0
      %2343 = vdwg.mxu0
      %2344 = vst [vmem:[%s305] sm:$0xff] %v2341
      %p2345 = scmp.lt.s32.totalorder %s19, 3
      %s2346 = scalar_select %p2345, %s19, 3
      %s2347 = smul.addr %s2346, 8
      %s2348 = scalar_lea.vmem %s8, %s2347
      // Predicated region
      $region53: #{forward.1} parent=51 // pred_check
        %p2349 = pneg %p210
      $region54: #{forward.1} parent=51 // pred_check_branch
        %2351 = sbr.rel (%p2349) target = $region56
      $region55: #{forward.1} parent=51 // pred_region
        _
      $region56: #{forward.1} parent=51 // pred_fallthru
        _
    $region52: #{forward.1} parent=5 // pred_fallthru
      _
    %p2352 = scmp.le.s32.totalorder 2, %s14
    // Predicated region
    $region57: #{forward.1} parent=5 // pred_check
      %p2353 = pneg %p2352
    $region58: #{forward.1} parent=5 // pred_check_branch
      %2355 = sbr.rel (%p2353) target = $region60
    $region59: #{forward.1} parent=5 // pred_region
      %s2356 = ssub.s32 %s14, 2
      // Predicated region
      $region61: #{forward.1} parent=59 // pred_check
        %p2357 = pneg %p216
      $region62: #{forward.1} parent=59 // pred_check_branch
        %2359 = sbr.rel (%p2357) target = $region64
      $region63: #{forward.1} parent=59 // pred_region
        %p2360 = scmp.lt.s32.totalorder %s20, 3
        %s2361 = scalar_select %p2360, %s20, 3
        %s2362 = smul.addr %s2361, 8
        %s2363 = scalar_lea.vmem %s8, %s2362
      $region64: #{forward.1} parent=59 // pred_fallthru
        _
    $region60: #{forward.1} parent=5 // pred_fallthru
      _
  $region6: #{forward.1} parent=0 // loop_footer
    %s18 = sadd.s32 1, %s14
  $region7: #{forward.1} parent=0 // loop_footer_branch
    %13 = sbr.rel target = $region3
  $region8: #{forward.1} parent=0 // loop_exit
    _

</llo_original>
